<compile_context>
chip_gen: v7x
topology: tpu7x:2x2x1
jax: 0.10.0
libtpu: 0.0.40
codegen_flags: <defaults>
</compile_context>

<pallas_src>
import functools

import jax
import jax.numpy as jnp
from jax import lax
from jax.experimental import pallas as pl
from jax.experimental.pallas import tpu as pltpu


def _lstm_stack_kernel(x_ref, w_ref, b_ref, out_ref, hn_ref, cn_ref, act_ref):
    """Full stacked-LSTM forward in one kernel invocation.

    x_ref:   (T, B, Dmax)      zero-padded input, f32
    w_ref:   (L, Dmax+H, 4H)   fused [W_ih^T (padded) ; W_hh^T] per layer
    b_ref:   (L, 1, 4H)        combined bias (b_ih + b_hh) per layer
    out_ref: (T, B, H)         last layer's per-step hidden states
    hn_ref:  (L, B, H)         final hidden state per layer
    cn_ref:  (L, B, H)         final cell state per layer
    act_ref: VMEM scratch (T, B, Dmax) — inter-layer activation slab
    """
    T, B, Dmax = act_ref.shape
    L = w_ref.shape[0]
    H = hn_ref.shape[-1]

    # Stage the (already padded) input once into the inter-layer activation slab.
    act_ref[...] = x_ref[...]

    # Full unroll for short sequences gives the LLO scheduler straight-line code.
    unroll = True if T <= 32 else 8

    for layer in range(L):                       # static unroll over layers
        w_cat = w_ref[layer]                     # (Dmax+H, 4H), resident in vregs
        bias = jnp.broadcast_to(b_ref[layer], (B, 4 * H))   # hoisted broadcast
        is_last = layer == L - 1

        def step(t, carry, w_cat=w_cat, bias=bias, is_last=is_last):
            h_prev, c_prev = carry                              # (B, H) f32 in vregs
            x_t = act_ref[t]                                    # (B, Dmax)
            xh = jnp.concatenate([x_t, h_prev], axis=-1)        # (B, Dmax+H)
            # One fused MXU matmul per step, PyTorch gate order [i, f, g, o].
            gates = jnp.dot(xh, w_cat, preferred_element_type=jnp.float32) + bias
            i_g = jax.nn.sigmoid(gates[:, 0:H])
            f_g = jax.nn.sigmoid(gates[:, H:2 * H])
            g_g = jnp.tanh(gates[:, 2 * H:3 * H])
            o_g = jax.nn.sigmoid(gates[:, 3 * H:4 * H])
            c_new = f_g * c_prev + i_g * g_g
            h_new = o_g * jnp.tanh(c_new)
            if is_last:
                out_ref[t] = h_new.astype(out_ref.dtype)
            else:
                if Dmax > H:
                    # Padded columns are multiplied by zero weight rows, so their
                    # contents don't matter; keep a full-width store.
                    h_store = jnp.concatenate([h_new, x_t[:, H:Dmax]], axis=-1)
                else:
                    h_store = h_new
                act_ref[t] = h_store
            return (h_new, c_new)

        h0 = jnp.zeros((B, H), jnp.float32)
        c0 = jnp.zeros((B, H), jnp.float32)
        h_n, c_n = lax.fori_loop(0, T, step, (h0, c0), unroll=unroll)
        hn_ref[layer] = h_n.astype(hn_ref.dtype)
        cn_ref[layer] = c_n.astype(cn_ref.dtype)


def _lstm_stack_pallas(x_tm, w_cat, bias, hidden):
    """x_tm: (T, B, Dmax) f32; w_cat: (L, Dmax+H, 4H); bias: (L, 1, 4H)."""
    T, B, Dmax = x_tm.shape
    L = w_cat.shape[0]
    H = hidden

    out_shapes = (
        jax.ShapeDtypeStruct((T, B, H), jnp.float32),   # last layer per-step output
        jax.ShapeDtypeStruct((L, B, H), jnp.float32),   # h_n
        jax.ShapeDtypeStruct((L, B, H), jnp.float32),   # c_n
    )

    grid_spec = pltpu.PrefetchScalarGridSpec(
        num_scalar_prefetch=0,
        grid=(1,),                                       # single invocation; recurrence is in-kernel
        in_specs=[
            pl.BlockSpec((T, B, Dmax), lambda i: (0, 0, 0)),
            pl.BlockSpec((L, Dmax + H, 4 * H), lambda i: (0, 0, 0)),
            pl.BlockSpec((L, 1, 4 * H), lambda i: (0, 0, 0)),
        ],
        out_specs=[
            pl.BlockSpec((T, B, H), lambda i: (0, 0, 0)),
            pl.BlockSpec((L, B, H), lambda i: (0, 0, 0)),
            pl.BlockSpec((L, B, H), lambda i: (0, 0, 0)),
        ],
        scratch_shapes=[
            pltpu.VMEM((T, B, Dmax), jnp.float32),       # inter-layer activation slab
        ],
    )

    return pl.pallas_call(
        _lstm_stack_kernel,
        out_shape=out_shapes,
        grid_spec=grid_spec,
        compiler_params=pltpu.CompilerParams(
            dimension_semantics=("arbitrary",)),
    )(x_tm, w_cat, bias)


def init_lstm_params(key, num_layers, d_input, d_hidden):
    """Deterministic init mirroring torch.nn.LSTM: U(-1/sqrt(H), 1/sqrt(H))."""
    params = []
    k = 1.0 / jnp.sqrt(jnp.float32(d_hidden))
    for layer in range(num_layers):
        d_in = d_input if layer == 0 else d_hidden
        key, k1, k2, k3, k4 = jax.random.split(key, 5)
        w_ih = jax.random.uniform(k1, (4 * d_hidden, d_in), jnp.float32, -k, k)
        w_hh = jax.random.uniform(k2, (4 * d_hidden, d_hidden), jnp.float32, -k, k)
        b_ih = jax.random.uniform(k3, (4 * d_hidden,), jnp.float32, -k, k)
        b_hh = jax.random.uniform(k4, (4 * d_hidden,), jnp.float32, -k, k)
        params.append((w_ih, w_hh, b_ih, b_hh))
    return params


@jax.jit
def rnn_model_forward(x, params):
    """Equivalent of RNNModel.forward: returns (output, (h_n, c_n)).

    x: (B, T, D_in) float32, batch_first=True, unidirectional, dropout=0.0.
    """
    B, T, D_in = x.shape
    H = params[0][1].shape[1]          # w_hh: (4H, H)
    Dmax = max(D_in, H)

    # Build fused per-layer weights once: rows [0:Dmax] act on the (padded) layer
    # input, rows [Dmax:Dmax+H] on the recurrent h. Padded rows are zero so padded
    # activation columns never contribute.
    w_stack, b_stack = [], []
    for (w_ih, w_hh, b_ih, b_hh) in params:
        d_in = w_ih.shape[1]
        w_x = jnp.zeros((Dmax, 4 * H), jnp.float32).at[:d_in, :].set(
            w_ih.T.astype(jnp.float32))
        w_stack.append(jnp.concatenate([w_x, w_hh.T.astype(jnp.float32)], axis=0))
        b_stack.append((b_ih + b_hh).astype(jnp.float32)[None, :])
    w_cat = jnp.stack(w_stack, axis=0)          # (L, Dmax+H, 4H)
    bias = jnp.stack(b_stack, axis=0)           # (L, 1, 4H)

    # One transpose of input / output per forward (layers are fused in-kernel).
    x_tm = jnp.transpose(x, (1, 0, 2)).astype(jnp.float32)     # (T, B, D_in)
    if Dmax > D_in:
        x_tm = jnp.pad(x_tm, ((0, 0), (0, 0), (0, Dmax - D_in)))

    out_tm, h_n, c_n = _lstm_stack_pallas(x_tm, w_cat, bias, H)
    output = jnp.transpose(out_tm, (1, 0, 2))                  # (B, T, H)
    return output, (h_n, c_n)


def _lstm_reference(x, params):
    """Pure-JAX reference (lax.scan, HIGHEST matmul precision) for correctness."""
    hp = jax.lax.Precision.HIGHEST
    x_t = jnp.transpose(x, (1, 0, 2)).astype(jnp.float32)      # (T, B, D)
    B = x_t.shape[1]
    h_ns, c_ns = [], []
    for (w_ih, w_hh, b_ih, b_hh) in params:
        H = w_hh.shape[1]

        def step(carry, xt, w_ih=w_ih, w_hh=w_hh, b_ih=b_ih, b_hh=b_hh, H=H):
            h, c = carry
            g = (jnp.dot(xt, w_ih.T, precision=hp)
                 + jnp.dot(h, w_hh.T, precision=hp) + b_ih + b_hh)
            i = jax.nn.sigmoid(g[:, 0:H])
            f = jax.nn.sigmoid(g[:, H:2 * H])
            gg = jnp.tanh(g[:, 2 * H:3 * H])
            o = jax.nn.sigmoid(g[:, 3 * H:4 * H])
            c = f * c + i * gg
            h = o * jnp.tanh(c)
            return (h, c), h

        init = (jnp.zeros((B, H), jnp.float32), jnp.zeros((B, H), jnp.float32))
        (h_n, c_n), out = lax.scan(step, init, x_t)
        x_t = out
        h_ns.append(h_n)
        c_ns.append(c_n)
    return jnp.transpose(x_t, (1, 0, 2)), (jnp.stack(h_ns), jnp.stack(c_ns))


if __name__ == "__main__":
    # Module config: num_layers=2, d_input=16, d_hidden=32, dropout=0.0,
    # bidirectional=False, batch_first=True.
    num_layers, d_input, d_hidden = 2, 16, 32
    batch, seq = 2, 8

    key = jax.random.PRNGKey(0)
    kx, kp = jax.random.split(key)
    x = jax.random.normal(kx, (batch, seq, d_input), jnp.float32)
    params = init_lstm_params(kp, num_layers, d_input, d_hidden)

    output, (h_n, c_n) = rnn_model_forward(x, params)
    jax.block_until_ready((output, h_n, c_n))

    # Correctness check against a pure-JAX reference (tightened tolerance; all-f32).
    ref_out, (ref_h, ref_c) = _lstm_reference(x, params)
    assert output.shape == (batch, seq, d_hidden)
    assert h_n.shape == (num_layers, batch, d_hidden)
    assert c_n.shape == (num_layers, batch, d_hidden)
    tol = 1e-4
    assert jnp.max(jnp.abs(output - ref_out)) < tol
    assert jnp.max(jnp.abs(h_n - ref_h)) < tol
    assert jnp.max(jnp.abs(c_n - ref_c)) < tol

    print("KERNEL_OK")
</pallas_src>

<mosaic_0001>
module attributes {stable_mosaic.version = 11 : i64} {
  func.func @_lstm_stack_kernel(%arg0: i32, %arg1: memref<8x2x32xf32, #tpu.memory_space<vmem>>, %arg2: memref<2x64x128xf32, #tpu.memory_space<vmem>>, %arg3: memref<2x1x128xf32, #tpu.memory_space<vmem>>, %arg4: memref<8x2x32xf32, #tpu.memory_space<vmem>>, %arg5: memref<2x2x32xf32, #tpu.memory_space<vmem>>, %arg6: memref<2x2x32xf32, #tpu.memory_space<vmem>>, %arg7: memref<8x2x32xf32, #tpu.memory_space<vmem>>) attributes {dimension_semantics = [#tpu.dimension_semantics<arbitrary>], iteration_bounds = array<i64: 1>, scalar_prefetch = 0 : i64, scratch_operands = 1 : i64, tpu.core_type = #tpu.core_type<tc>, window_params = [{pipeline_mode = #tpu.pipeline_mode<synchronous>, transform_indices = @transform_0, window_bounds = array<i64: 8, 2, 32>}, {pipeline_mode = #tpu.pipeline_mode<synchronous>, transform_indices = @transform_1, window_bounds = array<i64: 2, 64, 128>}, {pipeline_mode = #tpu.pipeline_mode<synchronous>, transform_indices = @transform_2, window_bounds = array<i64: 2, 1, 128>}, {pipeline_mode = #tpu.pipeline_mode<synchronous>, transform_indices = @transform_3, window_bounds = array<i64: 8, 2, 32>}, {pipeline_mode = #tpu.pipeline_mode<synchronous>, transform_indices = @transform_4, window_bounds = array<i64: 2, 2, 32>}, {pipeline_mode = #tpu.pipeline_mode<synchronous>, transform_indices = @transform_5, window_bounds = array<i64: 2, 2, 32>}]} {
    %c0 = arith.constant 0 : index
    %c0_0 = arith.constant 0 : index
    %c0_1 = arith.constant 0 : index
    %0 = vector.load %arg1[%c0, %c0_0, %c0_1] : memref<8x2x32xf32, #tpu.memory_space<vmem>>, vector<8x2x32xf32>
    %c0_2 = arith.constant 0 : index
    %c0_3 = arith.constant 0 : index
    %c0_4 = arith.constant 0 : index
    %1 = vector.load %arg7[%c0_2, %c0_3, %c0_4] : memref<8x2x32xf32, #tpu.memory_space<vmem>>, vector<8x2x32xf32>
    tpu.vector_store %arg7[%c0_2, %c0_3, %c0_4], %0 {strides = array<i32>} : memref<8x2x32xf32, #tpu.memory_space<vmem>>, vector<8x2x32xf32>,
    %c0_5 = arith.constant 0 : index
    %c0_6 = arith.constant 0 : index
    %c0_7 = arith.constant 0 : index
    %2 = vector.load %arg2[%c0_5, %c0_6, %c0_7] : memref<2x64x128xf32, #tpu.memory_space<vmem>>, vector<1x64x128xf32>
    %3 = vector.shape_cast %2 : vector<1x64x128xf32> to vector<64x128xf32>
    %c0_8 = arith.constant 0 : index
    %c0_9 = arith.constant 0 : index
    %c0_10 = arith.constant 0 : index
    %4 = vector.load %arg3[%c0_8, %c0_9, %c0_10] : memref<2x1x128xf32, #tpu.memory_space<vmem>>, vector<1x1x128xf32>
    %5 = vector.shape_cast %4 : vector<1x1x128xf32> to vector<1x128xf32>
    %6 = vector.shape_cast %5 : vector<1x128xf32> to vector<1x128xf32>
    %7 = vector.broadcast %6 : vector<1x128xf32> to vector<2x128xf32>
    %cst = arith.constant 0.000000e+00 : f32
    %8 = vector.broadcast %cst : f32 to vector<2x32xf32>
    %cst_11 = arith.constant 0.000000e+00 : f32
    %9 = vector.broadcast %cst_11 : f32 to vector<2x32xf32>
    %c0_i32 = arith.constant 0 : i32
    %10 = arith.index_cast %c0_i32 : i32 to index
    %c0_12 = arith.constant 0 : index
    %c0_13 = arith.constant 0 : index
    %11 = vector.load %arg7[%10, %c0_12, %c0_13] : memref<8x2x32xf32, #tpu.memory_space<vmem>>, vector<1x2x32xf32>
    %12 = vector.shape_cast %11 : vector<1x2x32xf32> to vector<2x32xf32>
    %13 = tpu.concatenate %12, %8 in 1 : vector<2x32xf32>, vector<2x32xf32> -> vector<2x64xf32>
    %cst_14 = arith.constant dense<0.000000e+00> : vector<2x128xf32>
    %14 = tpu.matmul %13, %3, %cst_14 {dimension_numbers = #tpu.dot_dimension_numbers<[1], [0], [0], [1], [0, 0, 1, 1], [], []>} : vector<2x64xf32>, vector<64x128xf32>, vector<2x128xf32> -> vector<2x128xf32>
    %15 = arith.addf %14, %7 : vector<2x128xf32>
    %16 = vector.extract_strided_slice %15 {offsets = [0, 0], sizes = [2, 32], strides = [1, 1]} : vector<2x128xf32> to vector<2x32xf32>
    %17 = arith.negf %16 : vector<2x32xf32>
    %18 = math.exp %17 : vector<2x32xf32>
    %cst_15 = arith.constant 1.000000e+00 : f32
    %19 = vector.broadcast %cst_15 : f32 to vector<2x32xf32>
    %20 = arith.addf %19, %18 : vector<2x32xf32>
    %21 = arith.divf %19, %20 : vector<2x32xf32>
    %22 = vector.extract_strided_slice %15 {offsets = [0, 32], sizes = [2, 32], strides = [1, 1]} : vector<2x128xf32> to vector<2x32xf32>
    %23 = arith.negf %22 : vector<2x32xf32>
    %24 = math.exp %23 : vector<2x32xf32>
    %cst_16 = arith.constant 1.000000e+00 : f32
    %25 = vector.broadcast %cst_16 : f32 to vector<2x32xf32>
    %26 = arith.addf %25, %24 : vector<2x32xf32>
    %27 = arith.divf %25, %26 : vector<2x32xf32>
    %28 = vector.extract_strided_slice %15 {offsets = [0, 64], sizes = [2, 32], strides = [1, 1]} : vector<2x128xf32> to vector<2x32xf32>
    %29 = math.tanh %28 : vector<2x32xf32>
    %30 = vector.extract_strided_slice %15 {offsets = [0, 96], sizes = [2, 32], strides = [1, 1]} : vector<2x128xf32> to vector<2x32xf32>
    %31 = arith.negf %30 : vector<2x32xf32>
    %32 = math.exp %31 : vector<2x32xf32>
    %cst_17 = arith.constant 1.000000e+00 : f32
    %33 = vector.broadcast %cst_17 : f32 to vector<2x32xf32>
    %34 = arith.addf %33, %32 : vector<2x32xf32>
    %35 = arith.divf %33, %34 : vector<2x32xf32>
    %36 = arith.mulf %27, %9 : vector<2x32xf32>
    %37 = arith.mulf %21, %29 : vector<2x32xf32>
    %38 = arith.addf %36, %37 : vector<2x32xf32>
    %39 = math.tanh %38 : vector<2x32xf32>
    %40 = arith.mulf %35, %39 : vector<2x32xf32>
    %41 = arith.index_cast %c0_i32 : i32 to index
    %c0_18 = arith.constant 0 : index
    %c0_19 = arith.constant 0 : index
    %42 = vector.load %arg7[%41, %c0_18, %c0_19] : memref<8x2x32xf32, #tpu.memory_space<vmem>>, vector<1x2x32xf32>
    %43 = vector.shape_cast %42 : vector<1x2x32xf32> to vector<2x32xf32>
    %44 = vector.shape_cast %40 : vector<2x32xf32> to vector<1x2x32xf32>
    tpu.vector_store %arg7[%41, %c0_18, %c0_19], %44 {strides = array<i32>} : memref<8x2x32xf32, #tpu.memory_space<vmem>>, vector<1x2x32xf32>,
    %c1_i32 = arith.constant 1 : i32
    %45 = arith.index_cast %c1_i32 : i32 to index
    %c0_20 = arith.constant 0 : index
    %c0_21 = arith.constant 0 : index
    %46 = vector.load %arg7[%45, %c0_20, %c0_21] : memref<8x2x32xf32, #tpu.memory_space<vmem>>, vector<1x2x32xf32>
    %47 = vector.shape_cast %46 : vector<1x2x32xf32> to vector<2x32xf32>
    %48 = tpu.concatenate %47, %40 in 1 : vector<2x32xf32>, vector<2x32xf32> -> vector<2x64xf32>
    %cst_22 = arith.constant dense<0.000000e+00> : vector<2x128xf32>
    %49 = tpu.matmul %48, %3, %cst_22 {dimension_numbers = #tpu.dot_dimension_numbers<[1], [0], [0], [1], [0, 0, 1, 1], [], []>} : vector<2x64xf32>, vector<64x128xf32>, vector<2x128xf32> -> vector<2x128xf32>
    %50 = arith.addf %49, %7 : vector<2x128xf32>
    %51 = vector.extract_strided_slice %50 {offsets = [0, 0], sizes = [2, 32], strides = [1, 1]} : vector<2x128xf32> to vector<2x32xf32>
    %52 = arith.negf %51 : vector<2x32xf32>
    %53 = math.exp %52 : vector<2x32xf32>
    %cst_23 = arith.constant 1.000000e+00 : f32
    %54 = vector.broadcast %cst_23 : f32 to vector<2x32xf32>
    %55 = arith.addf %54, %53 : vector<2x32xf32>
    %56 = arith.divf %54, %55 : vector<2x32xf32>
    %57 = vector.extract_strided_slice %50 {offsets = [0, 32], sizes = [2, 32], strides = [1, 1]} : vector<2x128xf32> to vector<2x32xf32>
    %58 = arith.negf %57 : vector<2x32xf32>
    %59 = math.exp %58 : vector<2x32xf32>
    %cst_24 = arith.constant 1.000000e+00 : f32
    %60 = vector.broadcast %cst_24 : f32 to vector<2x32xf32>
    %61 = arith.addf %60, %59 : vector<2x32xf32>
    %62 = arith.divf %60, %61 : vector<2x32xf32>
    %63 = vector.extract_strided_slice %50 {offsets = [0, 64], sizes = [2, 32], strides = [1, 1]} : vector<2x128xf32> to vector<2x32xf32>
    %64 = math.tanh %63 : vector<2x32xf32>
    %65 = vector.extract_strided_slice %50 {offsets = [0, 96], sizes = [2, 32], strides = [1, 1]} : vector<2x128xf32> to vector<2x32xf32>
    %66 = arith.negf %65 : vector<2x32xf32>
    %67 = math.exp %66 : vector<2x32xf32>
    %cst_25 = arith.constant 1.000000e+00 : f32
    %68 = vector.broadcast %cst_25 : f32 to vector<2x32xf32>
    %69 = arith.addf %68, %67 : vector<2x32xf32>
    %70 = arith.divf %68, %69 : vector<2x32xf32>
    %71 = arith.mulf %62, %38 : vector<2x32xf32>
    %72 = arith.mulf %56, %64 : vector<2x32xf32>
    %73 = arith.addf %71, %72 : vector<2x32xf32>
    %74 = math.tanh %73 : vector<2x32xf32>
    %75 = arith.mulf %70, %74 : vector<2x32xf32>
    %76 = arith.index_cast %c1_i32 : i32 to index
    %c0_26 = arith.constant 0 : index
    %c0_27 = arith.constant 0 : index
    %77 = vector.load %arg7[%76, %c0_26, %c0_27] : memref<8x2x32xf32, #tpu.memory_space<vmem>>, vector<1x2x32xf32>
    %78 = vector.shape_cast %77 : vector<1x2x32xf32> to vector<2x32xf32>
    %79 = vector.shape_cast %75 : vector<2x32xf32> to vector<1x2x32xf32>
    tpu.vector_store %arg7[%76, %c0_26, %c0_27], %79 {strides = array<i32>} : memref<8x2x32xf32, #tpu.memory_space<vmem>>, vector<1x2x32xf32>,
    %c2_i32 = arith.constant 2 : i32
    %80 = arith.index_cast %c2_i32 : i32 to index
    %c0_28 = arith.constant 0 : index
    %c0_29 = arith.constant 0 : index
    %81 = vector.load %arg7[%80, %c0_28, %c0_29] : memref<8x2x32xf32, #tpu.memory_space<vmem>>, vector<1x2x32xf32>
    %82 = vector.shape_cast %81 : vector<1x2x32xf32> to vector<2x32xf32>
    %83 = tpu.concatenate %82, %75 in 1 : vector<2x32xf32>, vector<2x32xf32> -> vector<2x64xf32>
    %cst_30 = arith.constant dense<0.000000e+00> : vector<2x128xf32>
    %84 = tpu.matmul %83, %3, %cst_30 {dimension_numbers = #tpu.dot_dimension_numbers<[1], [0], [0], [1], [0, 0, 1, 1], [], []>} : vector<2x64xf32>, vector<64x128xf32>, vector<2x128xf32> -> vector<2x128xf32>
    %85 = arith.addf %84, %7 : vector<2x128xf32>
    %86 = vector.extract_strided_slice %85 {offsets = [0, 0], sizes = [2, 32], strides = [1, 1]} : vector<2x128xf32> to vector<2x32xf32>
    %87 = arith.negf %86 : vector<2x32xf32>
    %88 = math.exp %87 : vector<2x32xf32>
    %cst_31 = arith.constant 1.000000e+00 : f32
    %89 = vector.broadcast %cst_31 : f32 to vector<2x32xf32>
    %90 = arith.addf %89, %88 : vector<2x32xf32>
    %91 = arith.divf %89, %90 : vector<2x32xf32>
    %92 = vector.extract_strided_slice %85 {offsets = [0, 32], sizes = [2, 32], strides = [1, 1]} : vector<2x128xf32> to vector<2x32xf32>
    %93 = arith.negf %92 : vector<2x32xf32>
    %94 = math.exp %93 : vector<2x32xf32>
    %cst_32 = arith.constant 1.000000e+00 : f32
    %95 = vector.broadcast %cst_32 : f32 to vector<2x32xf32>
    %96 = arith.addf %95, %94 : vector<2x32xf32>
    %97 = arith.divf %95, %96 : vector<2x32xf32>
    %98 = vector.extract_strided_slice %85 {offsets = [0, 64], sizes = [2, 32], strides = [1, 1]} : vector<2x128xf32> to vector<2x32xf32>
    %99 = math.tanh %98 : vector<2x32xf32>
    %100 = vector.extract_strided_slice %85 {offsets = [0, 96], sizes = [2, 32], strides = [1, 1]} : vector<2x128xf32> to vector<2x32xf32>
    %101 = arith.negf %100 : vector<2x32xf32>
    %102 = math.exp %101 : vector<2x32xf32>
    %cst_33 = arith.constant 1.000000e+00 : f32
    %103 = vector.broadcast %cst_33 : f32 to vector<2x32xf32>
    %104 = arith.addf %103, %102 : vector<2x32xf32>
    %105 = arith.divf %103, %104 : vector<2x32xf32>
    %106 = arith.mulf %97, %73 : vector<2x32xf32>
    %107 = arith.mulf %91, %99 : vector<2x32xf32>
    %108 = arith.addf %106, %107 : vector<2x32xf32>
    %109 = math.tanh %108 : vector<2x32xf32>
    %110 = arith.mulf %105, %109 : vector<2x32xf32>
    %111 = arith.index_cast %c2_i32 : i32 to index
    %c0_34 = arith.constant 0 : index
    %c0_35 = arith.constant 0 : index
    %112 = vector.load %arg7[%111, %c0_34, %c0_35] : memref<8x2x32xf32, #tpu.memory_space<vmem>>, vector<1x2x32xf32>
    %113 = vector.shape_cast %112 : vector<1x2x32xf32> to vector<2x32xf32>
    %114 = vector.shape_cast %110 : vector<2x32xf32> to vector<1x2x32xf32>
    tpu.vector_store %arg7[%111, %c0_34, %c0_35], %114 {strides = array<i32>} : memref<8x2x32xf32, #tpu.memory_space<vmem>>, vector<1x2x32xf32>,
    %c3_i32 = arith.constant 3 : i32
    %115 = arith.index_cast %c3_i32 : i32 to index
    %c0_36 = arith.constant 0 : index
    %c0_37 = arith.constant 0 : index
    %116 = vector.load %arg7[%115, %c0_36, %c0_37] : memref<8x2x32xf32, #tpu.memory_space<vmem>>, vector<1x2x32xf32>
    %117 = vector.shape_cast %116 : vector<1x2x32xf32> to vector<2x32xf32>
    %118 = tpu.concatenate %117, %110 in 1 : vector<2x32xf32>, vector<2x32xf32> -> vector<2x64xf32>
    %cst_38 = arith.constant dense<0.000000e+00> : vector<2x128xf32>
    %119 = tpu.matmul %118, %3, %cst_38 {dimension_numbers = #tpu.dot_dimension_numbers<[1], [0], [0], [1], [0, 0, 1, 1], [], []>} : vector<2x64xf32>, vector<64x128xf32>, vector<2x128xf32> -> vector<2x128xf32>
    %120 = arith.addf %119, %7 : vector<2x128xf32>
    %121 = vector.extract_strided_slice %120 {offsets = [0, 0], sizes = [2, 32], strides = [1, 1]} : vector<2x128xf32> to vector<2x32xf32>
    %122 = arith.negf %121 : vector<2x32xf32>
    %123 = math.exp %122 : vector<2x32xf32>
    %cst_39 = arith.constant 1.000000e+00 : f32
    %124 = vector.broadcast %cst_39 : f32 to vector<2x32xf32>
    %125 = arith.addf %124, %123 : vector<2x32xf32>
    %126 = arith.divf %124, %125 : vector<2x32xf32>
    %127 = vector.extract_strided_slice %120 {offsets = [0, 32], sizes = [2, 32], strides = [1, 1]} : vector<2x128xf32> to vector<2x32xf32>
    %128 = arith.negf %127 : vector<2x32xf32>
    %129 = math.exp %128 : vector<2x32xf32>
    %cst_40 = arith.constant 1.000000e+00 : f32
    %130 = vector.broadcast %cst_40 : f32 to vector<2x32xf32>
    %131 = arith.addf %130, %129 : vector<2x32xf32>
    %132 = arith.divf %130, %131 : vector<2x32xf32>
    %133 = vector.extract_strided_slice %120 {offsets = [0, 64], sizes = [2, 32], strides = [1, 1]} : vector<2x128xf32> to vector<2x32xf32>
    %134 = math.tanh %133 : vector<2x32xf32>
    %135 = vector.extract_strided_slice %120 {offsets = [0, 96], sizes = [2, 32], strides = [1, 1]} : vector<2x128xf32> to vector<2x32xf32>
    %136 = arith.negf %135 : vector<2x32xf32>
    %137 = math.exp %136 : vector<2x32xf32>
    %cst_41 = arith.constant 1.000000e+00 : f32
    %138 = vector.broadcast %cst_41 : f32 to vector<2x32xf32>
    %139 = arith.addf %138, %137 : vector<2x32xf32>
    %140 = arith.divf %138, %139 : vector<2x32xf32>
    %141 = arith.mulf %132, %108 : vector<2x32xf32>
    %142 = arith.mulf %126, %134 : vector<2x32xf32>
    %143 = arith.addf %141, %142 : vector<2x32xf32>
    %144 = math.tanh %143 : vector<2x32xf32>
    %145 = arith.mulf %140, %144 : vector<2x32xf32>
    %146 = arith.index_cast %c3_i32 : i32 to index
    %c0_42 = arith.constant 0 : index
    %c0_43 = arith.constant 0 : index
    %147 = vector.load %arg7[%146, %c0_42, %c0_43] : memref<8x2x32xf32, #tpu.memory_space<vmem>>, vector<1x2x32xf32>
    %148 = vector.shape_cast %147 : vector<1x2x32xf32> to vector<2x32xf32>
    %149 = vector.shape_cast %145 : vector<2x32xf32> to vector<1x2x32xf32>
    tpu.vector_store %arg7[%146, %c0_42, %c0_43], %149 {strides = array<i32>} : memref<8x2x32xf32, #tpu.memory_space<vmem>>, vector<1x2x32xf32>,
    %c4_i32 = arith.constant 4 : i32
    %150 = arith.index_cast %c4_i32 : i32 to index
    %c0_44 = arith.constant 0 : index
    %c0_45 = arith.constant 0 : index
    %151 = vector.load %arg7[%150, %c0_44, %c0_45] : memref<8x2x32xf32, #tpu.memory_space<vmem>>, vector<1x2x32xf32>
    %152 = vector.shape_cast %151 : vector<1x2x32xf32> to vector<2x32xf32>
    %153 = tpu.concatenate %152, %145 in 1 : vector<2x32xf32>, vector<2x32xf32> -> vector<2x64xf32>
    %cst_46 = arith.constant dense<0.000000e+00> : vector<2x128xf32>
    %154 = tpu.matmul %153, %3, %cst_46 {dimension_numbers = #tpu.dot_dimension_numbers<[1], [0], [0], [1], [0, 0, 1, 1], [], []>} : vector<2x64xf32>, vector<64x128xf32>, vector<2x128xf32> -> vector<2x128xf32>
    %155 = arith.addf %154, %7 : vector<2x128xf32>
    %156 = vector.extract_strided_slice %155 {offsets = [0, 0], sizes = [2, 32], strides = [1, 1]} : vector<2x128xf32> to vector<2x32xf32>
    %157 = arith.negf %156 : vector<2x32xf32>
    %158 = math.exp %157 : vector<2x32xf32>
    %cst_47 = arith.constant 1.000000e+00 : f32
    %159 = vector.broadcast %cst_47 : f32 to vector<2x32xf32>
    %160 = arith.addf %159, %158 : vector<2x32xf32>
    %161 = arith.divf %159, %160 : vector<2x32xf32>
    %162 = vector.extract_strided_slice %155 {offsets = [0, 32], sizes = [2, 32], strides = [1, 1]} : vector<2x128xf32> to vector<2x32xf32>
    %163 = arith.negf %162 : vector<2x32xf32>
    %164 = math.exp %163 : vector<2x32xf32>
    %cst_48 = arith.constant 1.000000e+00 : f32
    %165 = vector.broadcast %cst_48 : f32 to vector<2x32xf32>
    %166 = arith.addf %165, %164 : vector<2x32xf32>
    %167 = arith.divf %165, %166 : vector<2x32xf32>
    %168 = vector.extract_strided_slice %155 {offsets = [0, 64], sizes = [2, 32], strides = [1, 1]} : vector<2x128xf32> to vector<2x32xf32>
    %169 = math.tanh %168 : vector<2x32xf32>
    %170 = vector.extract_strided_slice %155 {offsets = [0, 96], sizes = [2, 32], strides = [1, 1]} : vector<2x128xf32> to vector<2x32xf32>
    %171 = arith.negf %170 : vector<2x32xf32>
    %172 = math.exp %171 : vector<2x32xf32>
    %cst_49 = arith.constant 1.000000e+00 : f32
    %173 = vector.broadcast %cst_49 : f32 to vector<2x32xf32>
    %174 = arith.addf %173, %172 : vector<2x32xf32>
    %175 = arith.divf %173, %174 : vector<2x32xf32>
    %176 = arith.mulf %167, %143 : vector<2x32xf32>
    %177 = arith.mulf %161, %169 : vector<2x32xf32>
    %178 = arith.addf %176, %177 : vector<2x32xf32>
    %179 = math.tanh %178 : vector<2x32xf32>
    %180 = arith.mulf %175, %179 : vector<2x32xf32>
    %181 = arith.index_cast %c4_i32 : i32 to index
    %c0_50 = arith.constant 0 : index
    %c0_51 = arith.constant 0 : index
    %182 = vector.load %arg7[%181, %c0_50, %c0_51] : memref<8x2x32xf32, #tpu.memory_space<vmem>>, vector<1x2x32xf32>
    %183 = vector.shape_cast %182 : vector<1x2x32xf32> to vector<2x32xf32>
    %184 = vector.shape_cast %180 : vector<2x32xf32> to vector<1x2x32xf32>
    tpu.vector_store %arg7[%181, %c0_50, %c0_51], %184 {strides = array<i32>} : memref<8x2x32xf32, #tpu.memory_space<vmem>>, vector<1x2x32xf32>,
    %c5_i32 = arith.constant 5 : i32
    %185 = arith.index_cast %c5_i32 : i32 to index
    %c0_52 = arith.constant 0 : index
    %c0_53 = arith.constant 0 : index
    %186 = vector.load %arg7[%185, %c0_52, %c0_53] : memref<8x2x32xf32, #tpu.memory_space<vmem>>, vector<1x2x32xf32>
    %187 = vector.shape_cast %186 : vector<1x2x32xf32> to vector<2x32xf32>
    %188 = tpu.concatenate %187, %180 in 1 : vector<2x32xf32>, vector<2x32xf32> -> vector<2x64xf32>
    %cst_54 = arith.constant dense<0.000000e+00> : vector<2x128xf32>
    %189 = tpu.matmul %188, %3, %cst_54 {dimension_numbers = #tpu.dot_dimension_numbers<[1], [0], [0], [1], [0, 0, 1, 1], [], []>} : vector<2x64xf32>, vector<64x128xf32>, vector<2x128xf32> -> vector<2x128xf32>
    %190 = arith.addf %189, %7 : vector<2x128xf32>
    %191 = vector.extract_strided_slice %190 {offsets = [0, 0], sizes = [2, 32], strides = [1, 1]} : vector<2x128xf32> to vector<2x32xf32>
    %192 = arith.negf %191 : vector<2x32xf32>
    %193 = math.exp %192 : vector<2x32xf32>
    %cst_55 = arith.constant 1.000000e+00 : f32
    %194 = vector.broadcast %cst_55 : f32 to vector<2x32xf32>
    %195 = arith.addf %194, %193 : vector<2x32xf32>
    %196 = arith.divf %194, %195 : vector<2x32xf32>
    %197 = vector.extract_strided_slice %190 {offsets = [0, 32], sizes = [2, 32], strides = [1, 1]} : vector<2x128xf32> to vector<2x32xf32>
    %198 = arith.negf %197 : vector<2x32xf32>
    %199 = math.exp %198 : vector<2x32xf32>
    %cst_56 = arith.constant 1.000000e+00 : f32
    %200 = vector.broadcast %cst_56 : f32 to vector<2x32xf32>
    %201 = arith.addf %200, %199 : vector<2x32xf32>
    %202 = arith.divf %200, %201 : vector<2x32xf32>
    %203 = vector.extract_strided_slice %190 {offsets = [0, 64], sizes = [2, 32], strides = [1, 1]} : vector<2x128xf32> to vector<2x32xf32>
    %204 = math.tanh %203 : vector<2x32xf32>
    %205 = vector.extract_strided_slice %190 {offsets = [0, 96], sizes = [2, 32], strides = [1, 1]} : vector<2x128xf32> to vector<2x32xf32>
    %206 = arith.negf %205 : vector<2x32xf32>
    %207 = math.exp %206 : vector<2x32xf32>
    %cst_57 = arith.constant 1.000000e+00 : f32
    %208 = vector.broadcast %cst_57 : f32 to vector<2x32xf32>
    %209 = arith.addf %208, %207 : vector<2x32xf32>
    %210 = arith.divf %208, %209 : vector<2x32xf32>
    %211 = arith.mulf %202, %178 : vector<2x32xf32>
    %212 = arith.mulf %196, %204 : vector<2x32xf32>
    %213 = arith.addf %211, %212 : vector<2x32xf32>
    %214 = math.tanh %213 : vector<2x32xf32>
    %215 = arith.mulf %210, %214 : vector<2x32xf32>
    %216 = arith.index_cast %c5_i32 : i32 to index
    %c0_58 = arith.constant 0 : index
    %c0_59 = arith.constant 0 : index
    %217 = vector.load %arg7[%216, %c0_58, %c0_59] : memref<8x2x32xf32, #tpu.memory_space<vmem>>, vector<1x2x32xf32>
    %218 = vector.shape_cast %217 : vector<1x2x32xf32> to vector<2x32xf32>
    %219 = vector.shape_cast %215 : vector<2x32xf32> to vector<1x2x32xf32>
    tpu.vector_store %arg7[%216, %c0_58, %c0_59], %219 {strides = array<i32>} : memref<8x2x32xf32, #tpu.memory_space<vmem>>, vector<1x2x32xf32>,
    %c6_i32 = arith.constant 6 : i32
    %220 = arith.index_cast %c6_i32 : i32 to index
    %c0_60 = arith.constant 0 : index
    %c0_61 = arith.constant 0 : index
    %221 = vector.load %arg7[%220, %c0_60, %c0_61] : memref<8x2x32xf32, #tpu.memory_space<vmem>>, vector<1x2x32xf32>
    %222 = vector.shape_cast %221 : vector<1x2x32xf32> to vector<2x32xf32>
    %223 = tpu.concatenate %222, %215 in 1 : vector<2x32xf32>, vector<2x32xf32> -> vector<2x64xf32>
    %cst_62 = arith.constant dense<0.000000e+00> : vector<2x128xf32>
    %224 = tpu.matmul %223, %3, %cst_62 {dimension_numbers = #tpu.dot_dimension_numbers<[1], [0], [0], [1], [0, 0, 1, 1], [], []>} : vector<2x64xf32>, vector<64x128xf32>, vector<2x128xf32> -> vector<2x128xf32>
    %225 = arith.addf %224, %7 : vector<2x128xf32>
    %226 = vector.extract_strided_slice %225 {offsets = [0, 0], sizes = [2, 32], strides = [1, 1]} : vector<2x128xf32> to vector<2x32xf32>
    %227 = arith.negf %226 : vector<2x32xf32>
    %228 = math.exp %227 : vector<2x32xf32>
    %cst_63 = arith.constant 1.000000e+00 : f32
    %229 = vector.broadcast %cst_63 : f32 to vector<2x32xf32>
    %230 = arith.addf %229, %228 : vector<2x32xf32>
    %231 = arith.divf %229, %230 : vector<2x32xf32>
    %232 = vector.extract_strided_slice %225 {offsets = [0, 32], sizes = [2, 32], strides = [1, 1]} : vector<2x128xf32> to vector<2x32xf32>
    %233 = arith.negf %232 : vector<2x32xf32>
    %234 = math.exp %233 : vector<2x32xf32>
    %cst_64 = arith.constant 1.000000e+00 : f32
    %235 = vector.broadcast %cst_64 : f32 to vector<2x32xf32>
    %236 = arith.addf %235, %234 : vector<2x32xf32>
    %237 = arith.divf %235, %236 : vector<2x32xf32>
    %238 = vector.extract_strided_slice %225 {offsets = [0, 64], sizes = [2, 32], strides = [1, 1]} : vector<2x128xf32> to vector<2x32xf32>
    %239 = math.tanh %238 : vector<2x32xf32>
    %240 = vector.extract_strided_slice %225 {offsets = [0, 96], sizes = [2, 32], strides = [1, 1]} : vector<2x128xf32> to vector<2x32xf32>
    %241 = arith.negf %240 : vector<2x32xf32>
    %242 = math.exp %241 : vector<2x32xf32>
    %cst_65 = arith.constant 1.000000e+00 : f32
    %243 = vector.broadcast %cst_65 : f32 to vector<2x32xf32>
    %244 = arith.addf %243, %242 : vector<2x32xf32>
    %245 = arith.divf %243, %244 : vector<2x32xf32>
    %246 = arith.mulf %237, %213 : vector<2x32xf32>
    %247 = arith.mulf %231, %239 : vector<2x32xf32>
    %248 = arith.addf %246, %247 : vector<2x32xf32>
    %249 = math.tanh %248 : vector<2x32xf32>
    %250 = arith.mulf %245, %249 : vector<2x32xf32>
    %251 = arith.index_cast %c6_i32 : i32 to index
    %c0_66 = arith.constant 0 : index
    %c0_67 = arith.constant 0 : index
    %252 = vector.load %arg7[%251, %c0_66, %c0_67] : memref<8x2x32xf32, #tpu.memory_space<vmem>>, vector<1x2x32xf32>
    %253 = vector.shape_cast %252 : vector<1x2x32xf32> to vector<2x32xf32>
    %254 = vector.shape_cast %250 : vector<2x32xf32> to vector<1x2x32xf32>
    tpu.vector_store %arg7[%251, %c0_66, %c0_67], %254 {strides = array<i32>} : memref<8x2x32xf32, #tpu.memory_space<vmem>>, vector<1x2x32xf32>,
    %c7_i32 = arith.constant 7 : i32
    %255 = arith.index_cast %c7_i32 : i32 to index
    %c0_68 = arith.constant 0 : index
    %c0_69 = arith.constant 0 : index
    %256 = vector.load %arg7[%255, %c0_68, %c0_69] : memref<8x2x32xf32, #tpu.memory_space<vmem>>, vector<1x2x32xf32>
    %257 = vector.shape_cast %256 : vector<1x2x32xf32> to vector<2x32xf32>
    %258 = tpu.concatenate %257, %250 in 1 : vector<2x32xf32>, vector<2x32xf32> -> vector<2x64xf32>
    %cst_70 = arith.constant dense<0.000000e+00> : vector<2x128xf32>
    %259 = tpu.matmul %258, %3, %cst_70 {dimension_numbers = #tpu.dot_dimension_numbers<[1], [0], [0], [1], [0, 0, 1, 1], [], []>} : vector<2x64xf32>, vector<64x128xf32>, vector<2x128xf32> -> vector<2x128xf32>
    %260 = arith.addf %259, %7 : vector<2x128xf32>
    %261 = vector.extract_strided_slice %260 {offsets = [0, 0], sizes = [2, 32], strides = [1, 1]} : vector<2x128xf32> to vector<2x32xf32>
    %262 = arith.negf %261 : vector<2x32xf32>
    %263 = math.exp %262 : vector<2x32xf32>
    %cst_71 = arith.constant 1.000000e+00 : f32
    %264 = vector.broadcast %cst_71 : f32 to vector<2x32xf32>
    %265 = arith.addf %264, %263 : vector<2x32xf32>
    %266 = arith.divf %264, %265 : vector<2x32xf32>
    %267 = vector.extract_strided_slice %260 {offsets = [0, 32], sizes = [2, 32], strides = [1, 1]} : vector<2x128xf32> to vector<2x32xf32>
    %268 = arith.negf %267 : vector<2x32xf32>
    %269 = math.exp %268 : vector<2x32xf32>
    %cst_72 = arith.constant 1.000000e+00 : f32
    %270 = vector.broadcast %cst_72 : f32 to vector<2x32xf32>
    %271 = arith.addf %270, %269 : vector<2x32xf32>
    %272 = arith.divf %270, %271 : vector<2x32xf32>
    %273 = vector.extract_strided_slice %260 {offsets = [0, 64], sizes = [2, 32], strides = [1, 1]} : vector<2x128xf32> to vector<2x32xf32>
    %274 = math.tanh %273 : vector<2x32xf32>
    %275 = vector.extract_strided_slice %260 {offsets = [0, 96], sizes = [2, 32], strides = [1, 1]} : vector<2x128xf32> to vector<2x32xf32>
    %276 = arith.negf %275 : vector<2x32xf32>
    %277 = math.exp %276 : vector<2x32xf32>
    %cst_73 = arith.constant 1.000000e+00 : f32
    %278 = vector.broadcast %cst_73 : f32 to vector<2x32xf32>
    %279 = arith.addf %278, %277 : vector<2x32xf32>
    %280 = arith.divf %278, %279 : vector<2x32xf32>
    %281 = arith.mulf %272, %248 : vector<2x32xf32>
    %282 = arith.mulf %266, %274 : vector<2x32xf32>
    %283 = arith.addf %281, %282 : vector<2x32xf32>
    %284 = math.tanh %283 : vector<2x32xf32>
    %285 = arith.mulf %280, %284 : vector<2x32xf32>
    %286 = arith.index_cast %c7_i32 : i32 to index
    %c0_74 = arith.constant 0 : index
    %c0_75 = arith.constant 0 : index
    %287 = vector.load %arg7[%286, %c0_74, %c0_75] : memref<8x2x32xf32, #tpu.memory_space<vmem>>, vector<1x2x32xf32>
    %288 = vector.shape_cast %287 : vector<1x2x32xf32> to vector<2x32xf32>
    %289 = vector.shape_cast %285 : vector<2x32xf32> to vector<1x2x32xf32>
    tpu.vector_store %arg7[%286, %c0_74, %c0_75], %289 {strides = array<i32>} : memref<8x2x32xf32, #tpu.memory_space<vmem>>, vector<1x2x32xf32>,
    %c8_i32 = arith.constant 8 : i32
    %c0_76 = arith.constant 0 : index
    %c0_77 = arith.constant 0 : index
    %c0_78 = arith.constant 0 : index
    %290 = vector.load %arg5[%c0_76, %c0_77, %c0_78] : memref<2x2x32xf32, #tpu.memory_space<vmem>>, vector<1x2x32xf32>
    %291 = vector.shape_cast %290 : vector<1x2x32xf32> to vector<2x32xf32>
    %292 = vector.shape_cast %285 : vector<2x32xf32> to vector<1x2x32xf32>
    tpu.vector_store %arg5[%c0_76, %c0_77, %c0_78], %292 {strides = array<i32>} : memref<2x2x32xf32, #tpu.memory_space<vmem>>, vector<1x2x32xf32>,
    %c0_79 = arith.constant 0 : index
    %c0_80 = arith.constant 0 : index
    %c0_81 = arith.constant 0 : index
    %293 = vector.load %arg6[%c0_79, %c0_80, %c0_81] : memref<2x2x32xf32, #tpu.memory_space<vmem>>, vector<1x2x32xf32>
    %294 = vector.shape_cast %293 : vector<1x2x32xf32> to vector<2x32xf32>
    %295 = vector.shape_cast %283 : vector<2x32xf32> to vector<1x2x32xf32>
    tpu.vector_store %arg6[%c0_79, %c0_80, %c0_81], %295 {strides = array<i32>} : memref<2x2x32xf32, #tpu.memory_space<vmem>>, vector<1x2x32xf32>,
    %c1 = arith.constant 1 : index
    %c0_82 = arith.constant 0 : index
    %c0_83 = arith.constant 0 : index
    %296 = vector.load %arg2[%c1, %c0_82, %c0_83] : memref<2x64x128xf32, #tpu.memory_space<vmem>>, vector<1x64x128xf32>
    %297 = vector.shape_cast %296 : vector<1x64x128xf32> to vector<64x128xf32>
    %c1_84 = arith.constant 1 : index
    %c0_85 = arith.constant 0 : index
    %c0_86 = arith.constant 0 : index
    %298 = vector.load %arg3[%c1_84, %c0_85, %c0_86] : memref<2x1x128xf32, #tpu.memory_space<vmem>>, vector<1x1x128xf32>
    %299 = vector.shape_cast %298 : vector<1x1x128xf32> to vector<1x128xf32>
    %300 = vector.shape_cast %299 : vector<1x128xf32> to vector<1x128xf32>
    %301 = vector.broadcast %300 : vector<1x128xf32> to vector<2x128xf32>
    %cst_87 = arith.constant 0.000000e+00 : f32
    %302 = vector.broadcast %cst_87 : f32 to vector<2x32xf32>
    %cst_88 = arith.constant 0.000000e+00 : f32
    %303 = vector.broadcast %cst_88 : f32 to vector<2x32xf32>
    %c0_i32_89 = arith.constant 0 : i32
    %304 = arith.index_cast %c0_i32_89 : i32 to index
    %c0_90 = arith.constant 0 : index
    %c0_91 = arith.constant 0 : index
    %305 = vector.load %arg7[%304, %c0_90, %c0_91] : memref<8x2x32xf32, #tpu.memory_space<vmem>>, vector<1x2x32xf32>
    %306 = vector.shape_cast %305 : vector<1x2x32xf32> to vector<2x32xf32>
    %307 = tpu.concatenate %306, %302 in 1 : vector<2x32xf32>, vector<2x32xf32> -> vector<2x64xf32>
    %cst_92 = arith.constant dense<0.000000e+00> : vector<2x128xf32>
    %308 = tpu.matmul %307, %297, %cst_92 {dimension_numbers = #tpu.dot_dimension_numbers<[1], [0], [0], [1], [0, 0, 1, 1], [], []>} : vector<2x64xf32>, vector<64x128xf32>, vector<2x128xf32> -> vector<2x128xf32>
    %309 = arith.addf %308, %301 : vector<2x128xf32>
    %310 = vector.extract_strided_slice %309 {offsets = [0, 0], sizes = [2, 32], strides = [1, 1]} : vector<2x128xf32> to vector<2x32xf32>
    %311 = arith.negf %310 : vector<2x32xf32>
    %312 = math.exp %311 : vector<2x32xf32>
    %cst_93 = arith.constant 1.000000e+00 : f32
    %313 = vector.broadcast %cst_93 : f32 to vector<2x32xf32>
    %314 = arith.addf %313, %312 : vector<2x32xf32>
    %315 = arith.divf %313, %314 : vector<2x32xf32>
    %316 = vector.extract_strided_slice %309 {offsets = [0, 32], sizes = [2, 32], strides = [1, 1]} : vector<2x128xf32> to vector<2x32xf32>
    %317 = arith.negf %316 : vector<2x32xf32>
    %318 = math.exp %317 : vector<2x32xf32>
    %cst_94 = arith.constant 1.000000e+00 : f32
    %319 = vector.broadcast %cst_94 : f32 to vector<2x32xf32>
    %320 = arith.addf %319, %318 : vector<2x32xf32>
    %321 = arith.divf %319, %320 : vector<2x32xf32>
    %322 = vector.extract_strided_slice %309 {offsets = [0, 64], sizes = [2, 32], strides = [1, 1]} : vector<2x128xf32> to vector<2x32xf32>
    %323 = math.tanh %322 : vector<2x32xf32>
    %324 = vector.extract_strided_slice %309 {offsets = [0, 96], sizes = [2, 32], strides = [1, 1]} : vector<2x128xf32> to vector<2x32xf32>
    %325 = arith.negf %324 : vector<2x32xf32>
    %326 = math.exp %325 : vector<2x32xf32>
    %cst_95 = arith.constant 1.000000e+00 : f32
    %327 = vector.broadcast %cst_95 : f32 to vector<2x32xf32>
    %328 = arith.addf %327, %326 : vector<2x32xf32>
    %329 = arith.divf %327, %328 : vector<2x32xf32>
    %330 = arith.mulf %321, %303 : vector<2x32xf32>
    %331 = arith.mulf %315, %323 : vector<2x32xf32>
    %332 = arith.addf %330, %331 : vector<2x32xf32>
    %333 = math.tanh %332 : vector<2x32xf32>
    %334 = arith.mulf %329, %333 : vector<2x32xf32>
    %335 = arith.index_cast %c0_i32_89 : i32 to index
    %c0_96 = arith.constant 0 : index
    %c0_97 = arith.constant 0 : index
    %336 = vector.load %arg4[%335, %c0_96, %c0_97] : memref<8x2x32xf32, #tpu.memory_space<vmem>>, vector<1x2x32xf32>
    %337 = vector.shape_cast %336 : vector<1x2x32xf32> to vector<2x32xf32>
    %338 = vector.shape_cast %334 : vector<2x32xf32> to vector<1x2x32xf32>
    tpu.vector_store %arg4[%335, %c0_96, %c0_97], %338 {strides = array<i32>} : memref<8x2x32xf32, #tpu.memory_space<vmem>>, vector<1x2x32xf32>,
    %c1_i32_98 = arith.constant 1 : i32
    %339 = arith.index_cast %c1_i32_98 : i32 to index
    %c0_99 = arith.constant 0 : index
    %c0_100 = arith.constant 0 : index
    %340 = vector.load %arg7[%339, %c0_99, %c0_100] : memref<8x2x32xf32, #tpu.memory_space<vmem>>, vector<1x2x32xf32>
    %341 = vector.shape_cast %340 : vector<1x2x32xf32> to vector<2x32xf32>
    %342 = tpu.concatenate %341, %334 in 1 : vector<2x32xf32>, vector<2x32xf32> -> vector<2x64xf32>
    %cst_101 = arith.constant dense<0.000000e+00> : vector<2x128xf32>
    %343 = tpu.matmul %342, %297, %cst_101 {dimension_numbers = #tpu.dot_dimension_numbers<[1], [0], [0], [1], [0, 0, 1, 1], [], []>} : vector<2x64xf32>, vector<64x128xf32>, vector<2x128xf32> -> vector<2x128xf32>
    %344 = arith.addf %343, %301 : vector<2x128xf32>
    %345 = vector.extract_strided_slice %344 {offsets = [0, 0], sizes = [2, 32], strides = [1, 1]} : vector<2x128xf32> to vector<2x32xf32>
    %346 = arith.negf %345 : vector<2x32xf32>
    %347 = math.exp %346 : vector<2x32xf32>
    %cst_102 = arith.constant 1.000000e+00 : f32
    %348 = vector.broadcast %cst_102 : f32 to vector<2x32xf32>
    %349 = arith.addf %348, %347 : vector<2x32xf32>
    %350 = arith.divf %348, %349 : vector<2x32xf32>
    %351 = vector.extract_strided_slice %344 {offsets = [0, 32], sizes = [2, 32], strides = [1, 1]} : vector<2x128xf32> to vector<2x32xf32>
    %352 = arith.negf %351 : vector<2x32xf32>
    %353 = math.exp %352 : vector<2x32xf32>
    %cst_103 = arith.constant 1.000000e+00 : f32
    %354 = vector.broadcast %cst_103 : f32 to vector<2x32xf32>
    %355 = arith.addf %354, %353 : vector<2x32xf32>
    %356 = arith.divf %354, %355 : vector<2x32xf32>
    %357 = vector.extract_strided_slice %344 {offsets = [0, 64], sizes = [2, 32], strides = [1, 1]} : vector<2x128xf32> to vector<2x32xf32>
    %358 = math.tanh %357 : vector<2x32xf32>
    %359 = vector.extract_strided_slice %344 {offsets = [0, 96], sizes = [2, 32], strides = [1, 1]} : vector<2x128xf32> to vector<2x32xf32>
    %360 = arith.negf %359 : vector<2x32xf32>
    %361 = math.exp %360 : vector<2x32xf32>
    %cst_104 = arith.constant 1.000000e+00 : f32
    %362 = vector.broadcast %cst_104 : f32 to vector<2x32xf32>
    %363 = arith.addf %362, %361 : vector<2x32xf32>
    %364 = arith.divf %362, %363 : vector<2x32xf32>
    %365 = arith.mulf %356, %332 : vector<2x32xf32>
    %366 = arith.mulf %350, %358 : vector<2x32xf32>
    %367 = arith.addf %365, %366 : vector<2x32xf32>
    %368 = math.tanh %367 : vector<2x32xf32>
    %369 = arith.mulf %364, %368 : vector<2x32xf32>
    %370 = arith.index_cast %c1_i32_98 : i32 to index
    %c0_105 = arith.constant 0 : index
    %c0_106 = arith.constant 0 : index
    %371 = vector.load %arg4[%370, %c0_105, %c0_106] : memref<8x2x32xf32, #tpu.memory_space<vmem>>, vector<1x2x32xf32>
    %372 = vector.shape_cast %371 : vector<1x2x32xf32> to vector<2x32xf32>
    %373 = vector.shape_cast %369 : vector<2x32xf32> to vector<1x2x32xf32>
    tpu.vector_store %arg4[%370, %c0_105, %c0_106], %373 {strides = array<i32>} : memref<8x2x32xf32, #tpu.memory_space<vmem>>, vector<1x2x32xf32>,
    %c2_i32_107 = arith.constant 2 : i32
    %374 = arith.index_cast %c2_i32_107 : i32 to index
    %c0_108 = arith.constant 0 : index
    %c0_109 = arith.constant 0 : index
    %375 = vector.load %arg7[%374, %c0_108, %c0_109] : memref<8x2x32xf32, #tpu.memory_space<vmem>>, vector<1x2x32xf32>
    %376 = vector.shape_cast %375 : vector<1x2x32xf32> to vector<2x32xf32>
    %377 = tpu.concatenate %376, %369 in 1 : vector<2x32xf32>, vector<2x32xf32> -> vector<2x64xf32>
    %cst_110 = arith.constant dense<0.000000e+00> : vector<2x128xf32>
    %378 = tpu.matmul %377, %297, %cst_110 {dimension_numbers = #tpu.dot_dimension_numbers<[1], [0], [0], [1], [0, 0, 1, 1], [], []>} : vector<2x64xf32>, vector<64x128xf32>, vector<2x128xf32> -> vector<2x128xf32>
    %379 = arith.addf %378, %301 : vector<2x128xf32>
    %380 = vector.extract_strided_slice %379 {offsets = [0, 0], sizes = [2, 32], strides = [1, 1]} : vector<2x128xf32> to vector<2x32xf32>
    %381 = arith.negf %380 : vector<2x32xf32>
    %382 = math.exp %381 : vector<2x32xf32>
    %cst_111 = arith.constant 1.000000e+00 : f32
    %383 = vector.broadcast %cst_111 : f32 to vector<2x32xf32>
    %384 = arith.addf %383, %382 : vector<2x32xf32>
    %385 = arith.divf %383, %384 : vector<2x32xf32>
    %386 = vector.extract_strided_slice %379 {offsets = [0, 32], sizes = [2, 32], strides = [1, 1]} : vector<2x128xf32> to vector<2x32xf32>
    %387 = arith.negf %386 : vector<2x32xf32>
    %388 = math.exp %387 : vector<2x32xf32>
    %cst_112 = arith.constant 1.000000e+00 : f32
    %389 = vector.broadcast %cst_112 : f32 to vector<2x32xf32>
    %390 = arith.addf %389, %388 : vector<2x32xf32>
    %391 = arith.divf %389, %390 : vector<2x32xf32>
    %392 = vector.extract_strided_slice %379 {offsets = [0, 64], sizes = [2, 32], strides = [1, 1]} : vector<2x128xf32> to vector<2x32xf32>
    %393 = math.tanh %392 : vector<2x32xf32>
    %394 = vector.extract_strided_slice %379 {offsets = [0, 96], sizes = [2, 32], strides = [1, 1]} : vector<2x128xf32> to vector<2x32xf32>
    %395 = arith.negf %394 : vector<2x32xf32>
    %396 = math.exp %395 : vector<2x32xf32>
    %cst_113 = arith.constant 1.000000e+00 : f32
    %397 = vector.broadcast %cst_113 : f32 to vector<2x32xf32>
    %398 = arith.addf %397, %396 : vector<2x32xf32>
    %399 = arith.divf %397, %398 : vector<2x32xf32>
    %400 = arith.mulf %391, %367 : vector<2x32xf32>
    %401 = arith.mulf %385, %393 : vector<2x32xf32>
    %402 = arith.addf %400, %401 : vector<2x32xf32>
    %403 = math.tanh %402 : vector<2x32xf32>
    %404 = arith.mulf %399, %403 : vector<2x32xf32>
    %405 = arith.index_cast %c2_i32_107 : i32 to index
    %c0_114 = arith.constant 0 : index
    %c0_115 = arith.constant 0 : index
    %406 = vector.load %arg4[%405, %c0_114, %c0_115] : memref<8x2x32xf32, #tpu.memory_space<vmem>>, vector<1x2x32xf32>
    %407 = vector.shape_cast %406 : vector<1x2x32xf32> to vector<2x32xf32>
    %408 = vector.shape_cast %404 : vector<2x32xf32> to vector<1x2x32xf32>
    tpu.vector_store %arg4[%405, %c0_114, %c0_115], %408 {strides = array<i32>} : memref<8x2x32xf32, #tpu.memory_space<vmem>>, vector<1x2x32xf32>,
    %c3_i32_116 = arith.constant 3 : i32
    %409 = arith.index_cast %c3_i32_116 : i32 to index
    %c0_117 = arith.constant 0 : index
    %c0_118 = arith.constant 0 : index
    %410 = vector.load %arg7[%409, %c0_117, %c0_118] : memref<8x2x32xf32, #tpu.memory_space<vmem>>, vector<1x2x32xf32>
    %411 = vector.shape_cast %410 : vector<1x2x32xf32> to vector<2x32xf32>
    %412 = tpu.concatenate %411, %404 in 1 : vector<2x32xf32>, vector<2x32xf32> -> vector<2x64xf32>
    %cst_119 = arith.constant dense<0.000000e+00> : vector<2x128xf32>
    %413 = tpu.matmul %412, %297, %cst_119 {dimension_numbers = #tpu.dot_dimension_numbers<[1], [0], [0], [1], [0, 0, 1, 1], [], []>} : vector<2x64xf32>, vector<64x128xf32>, vector<2x128xf32> -> vector<2x128xf32>
    %414 = arith.addf %413, %301 : vector<2x128xf32>
    %415 = vector.extract_strided_slice %414 {offsets = [0, 0], sizes = [2, 32], strides = [1, 1]} : vector<2x128xf32> to vector<2x32xf32>
    %416 = arith.negf %415 : vector<2x32xf32>
    %417 = math.exp %416 : vector<2x32xf32>
    %cst_120 = arith.constant 1.000000e+00 : f32
    %418 = vector.broadcast %cst_120 : f32 to vector<2x32xf32>
    %419 = arith.addf %418, %417 : vector<2x32xf32>
    %420 = arith.divf %418, %419 : vector<2x32xf32>
    %421 = vector.extract_strided_slice %414 {offsets = [0, 32], sizes = [2, 32], strides = [1, 1]} : vector<2x128xf32> to vector<2x32xf32>
    %422 = arith.negf %421 : vector<2x32xf32>
    %423 = math.exp %422 : vector<2x32xf32>
    %cst_121 = arith.constant 1.000000e+00 : f32
    %424 = vector.broadcast %cst_121 : f32 to vector<2x32xf32>
    %425 = arith.addf %424, %423 : vector<2x32xf32>
    %426 = arith.divf %424, %425 : vector<2x32xf32>
    %427 = vector.extract_strided_slice %414 {offsets = [0, 64], sizes = [2, 32], strides = [1, 1]} : vector<2x128xf32> to vector<2x32xf32>
    %428 = math.tanh %427 : vector<2x32xf32>
    %429 = vector.extract_strided_slice %414 {offsets = [0, 96], sizes = [2, 32], strides = [1, 1]} : vector<2x128xf32> to vector<2x32xf32>
    %430 = arith.negf %429 : vector<2x32xf32>
    %431 = math.exp %430 : vector<2x32xf32>
    %cst_122 = arith.constant 1.000000e+00 : f32
    %432 = vector.broadcast %cst_122 : f32 to vector<2x32xf32>
    %433 = arith.addf %432, %431 : vector<2x32xf32>
    %434 = arith.divf %432, %433 : vector<2x32xf32>
    %435 = arith.mulf %426, %402 : vector<2x32xf32>
    %436 = arith.mulf %420, %428 : vector<2x32xf32>
    %437 = arith.addf %435, %436 : vector<2x32xf32>
    %438 = math.tanh %437 : vector<2x32xf32>
    %439 = arith.mulf %434, %438 : vector<2x32xf32>
    %440 = arith.index_cast %c3_i32_116 : i32 to index
    %c0_123 = arith.constant 0 : index
    %c0_124 = arith.constant 0 : index
    %441 = vector.load %arg4[%440, %c0_123, %c0_124] : memref<8x2x32xf32, #tpu.memory_space<vmem>>, vector<1x2x32xf32>
    %442 = vector.shape_cast %441 : vector<1x2x32xf32> to vector<2x32xf32>
    %443 = vector.shape_cast %439 : vector<2x32xf32> to vector<1x2x32xf32>
    tpu.vector_store %arg4[%440, %c0_123, %c0_124], %443 {strides = array<i32>} : memref<8x2x32xf32, #tpu.memory_space<vmem>>, vector<1x2x32xf32>,
    %c4_i32_125 = arith.constant 4 : i32
    %444 = arith.index_cast %c4_i32_125 : i32 to index
    %c0_126 = arith.constant 0 : index
    %c0_127 = arith.constant 0 : index
    %445 = vector.load %arg7[%444, %c0_126, %c0_127] : memref<8x2x32xf32, #tpu.memory_space<vmem>>, vector<1x2x32xf32>
    %446 = vector.shape_cast %445 : vector<1x2x32xf32> to vector<2x32xf32>
    %447 = tpu.concatenate %446, %439 in 1 : vector<2x32xf32>, vector<2x32xf32> -> vector<2x64xf32>
    %cst_128 = arith.constant dense<0.000000e+00> : vector<2x128xf32>
    %448 = tpu.matmul %447, %297, %cst_128 {dimension_numbers = #tpu.dot_dimension_numbers<[1], [0], [0], [1], [0, 0, 1, 1], [], []>} : vector<2x64xf32>, vector<64x128xf32>, vector<2x128xf32> -> vector<2x128xf32>
    %449 = arith.addf %448, %301 : vector<2x128xf32>
    %450 = vector.extract_strided_slice %449 {offsets = [0, 0], sizes = [2, 32], strides = [1, 1]} : vector<2x128xf32> to vector<2x32xf32>
    %451 = arith.negf %450 : vector<2x32xf32>
    %452 = math.exp %451 : vector<2x32xf32>
    %cst_129 = arith.constant 1.000000e+00 : f32
    %453 = vector.broadcast %cst_129 : f32 to vector<2x32xf32>
    %454 = arith.addf %453, %452 : vector<2x32xf32>
    %455 = arith.divf %453, %454 : vector<2x32xf32>
    %456 = vector.extract_strided_slice %449 {offsets = [0, 32], sizes = [2, 32], strides = [1, 1]} : vector<2x128xf32> to vector<2x32xf32>
    %457 = arith.negf %456 : vector<2x32xf32>
    %458 = math.exp %457 : vector<2x32xf32>
    %cst_130 = arith.constant 1.000000e+00 : f32
    %459 = vector.broadcast %cst_130 : f32 to vector<2x32xf32>
    %460 = arith.addf %459, %458 : vector<2x32xf32>
    %461 = arith.divf %459, %460 : vector<2x32xf32>
    %462 = vector.extract_strided_slice %449 {offsets = [0, 64], sizes = [2, 32], strides = [1, 1]} : vector<2x128xf32> to vector<2x32xf32>
    %463 = math.tanh %462 : vector<2x32xf32>
    %464 = vector.extract_strided_slice %449 {offsets = [0, 96], sizes = [2, 32], strides = [1, 1]} : vector<2x128xf32> to vector<2x32xf32>
    %465 = arith.negf %464 : vector<2x32xf32>
    %466 = math.exp %465 : vector<2x32xf32>
    %cst_131 = arith.constant 1.000000e+00 : f32
    %467 = vector.broadcast %cst_131 : f32 to vector<2x32xf32>
    %468 = arith.addf %467, %466 : vector<2x32xf32>
    %469 = arith.divf %467, %468 : vector<2x32xf32>
    %470 = arith.mulf %461, %437 : vector<2x32xf32>
    %471 = arith.mulf %455, %463 : vector<2x32xf32>
    %472 = arith.addf %470, %471 : vector<2x32xf32>
    %473 = math.tanh %472 : vector<2x32xf32>
    %474 = arith.mulf %469, %473 : vector<2x32xf32>
    %475 = arith.index_cast %c4_i32_125 : i32 to index
    %c0_132 = arith.constant 0 : index
    %c0_133 = arith.constant 0 : index
    %476 = vector.load %arg4[%475, %c0_132, %c0_133] : memref<8x2x32xf32, #tpu.memory_space<vmem>>, vector<1x2x32xf32>
    %477 = vector.shape_cast %476 : vector<1x2x32xf32> to vector<2x32xf32>
    %478 = vector.shape_cast %474 : vector<2x32xf32> to vector<1x2x32xf32>
    tpu.vector_store %arg4[%475, %c0_132, %c0_133], %478 {strides = array<i32>} : memref<8x2x32xf32, #tpu.memory_space<vmem>>, vector<1x2x32xf32>,
    %c5_i32_134 = arith.constant 5 : i32
    %479 = arith.index_cast %c5_i32_134 : i32 to index
    %c0_135 = arith.constant 0 : index
    %c0_136 = arith.constant 0 : index
    %480 = vector.load %arg7[%479, %c0_135, %c0_136] : memref<8x2x32xf32, #tpu.memory_space<vmem>>, vector<1x2x32xf32>
    %481 = vector.shape_cast %480 : vector<1x2x32xf32> to vector<2x32xf32>
    %482 = tpu.concatenate %481, %474 in 1 : vector<2x32xf32>, vector<2x32xf32> -> vector<2x64xf32>
    %cst_137 = arith.constant dense<0.000000e+00> : vector<2x128xf32>
    %483 = tpu.matmul %482, %297, %cst_137 {dimension_numbers = #tpu.dot_dimension_numbers<[1], [0], [0], [1], [0, 0, 1, 1], [], []>} : vector<2x64xf32>, vector<64x128xf32>, vector<2x128xf32> -> vector<2x128xf32>
    %484 = arith.addf %483, %301 : vector<2x128xf32>
    %485 = vector.extract_strided_slice %484 {offsets = [0, 0], sizes = [2, 32], strides = [1, 1]} : vector<2x128xf32> to vector<2x32xf32>
    %486 = arith.negf %485 : vector<2x32xf32>
    %487 = math.exp %486 : vector<2x32xf32>
    %cst_138 = arith.constant 1.000000e+00 : f32
    %488 = vector.broadcast %cst_138 : f32 to vector<2x32xf32>
    %489 = arith.addf %488, %487 : vector<2x32xf32>
    %490 = arith.divf %488, %489 : vector<2x32xf32>
    %491 = vector.extract_strided_slice %484 {offsets = [0, 32], sizes = [2, 32], strides = [1, 1]} : vector<2x128xf32> to vector<2x32xf32>
    %492 = arith.negf %491 : vector<2x32xf32>
    %493 = math.exp %492 : vector<2x32xf32>
    %cst_139 = arith.constant 1.000000e+00 : f32
    %494 = vector.broadcast %cst_139 : f32 to vector<2x32xf32>
    %495 = arith.addf %494, %493 : vector<2x32xf32>
    %496 = arith.divf %494, %495 : vector<2x32xf32>
    %497 = vector.extract_strided_slice %484 {offsets = [0, 64], sizes = [2, 32], strides = [1, 1]} : vector<2x128xf32> to vector<2x32xf32>
    %498 = math.tanh %497 : vector<2x32xf32>
    %499 = vector.extract_strided_slice %484 {offsets = [0, 96], sizes = [2, 32], strides = [1, 1]} : vector<2x128xf32> to vector<2x32xf32>
    %500 = arith.negf %499 : vector<2x32xf32>
    %501 = math.exp %500 : vector<2x32xf32>
    %cst_140 = arith.constant 1.000000e+00 : f32
    %502 = vector.broadcast %cst_140 : f32 to vector<2x32xf32>
    %503 = arith.addf %502, %501 : vector<2x32xf32>
    %504 = arith.divf %502, %503 : vector<2x32xf32>
    %505 = arith.mulf %496, %472 : vector<2x32xf32>
    %506 = arith.mulf %490, %498 : vector<2x32xf32>
    %507 = arith.addf %505, %506 : vector<2x32xf32>
    %508 = math.tanh %507 : vector<2x32xf32>
    %509 = arith.mulf %504, %508 : vector<2x32xf32>
    %510 = arith.index_cast %c5_i32_134 : i32 to index
    %c0_141 = arith.constant 0 : index
    %c0_142 = arith.constant 0 : index
    %511 = vector.load %arg4[%510, %c0_141, %c0_142] : memref<8x2x32xf32, #tpu.memory_space<vmem>>, vector<1x2x32xf32>
    %512 = vector.shape_cast %511 : vector<1x2x32xf32> to vector<2x32xf32>
    %513 = vector.shape_cast %509 : vector<2x32xf32> to vector<1x2x32xf32>
    tpu.vector_store %arg4[%510, %c0_141, %c0_142], %513 {strides = array<i32>} : memref<8x2x32xf32, #tpu.memory_space<vmem>>, vector<1x2x32xf32>,
    %c6_i32_143 = arith.constant 6 : i32
    %514 = arith.index_cast %c6_i32_143 : i32 to index
    %c0_144 = arith.constant 0 : index
    %c0_145 = arith.constant 0 : index
    %515 = vector.load %arg7[%514, %c0_144, %c0_145] : memref<8x2x32xf32, #tpu.memory_space<vmem>>, vector<1x2x32xf32>
    %516 = vector.shape_cast %515 : vector<1x2x32xf32> to vector<2x32xf32>
    %517 = tpu.concatenate %516, %509 in 1 : vector<2x32xf32>, vector<2x32xf32> -> vector<2x64xf32>
    %cst_146 = arith.constant dense<0.000000e+00> : vector<2x128xf32>
    %518 = tpu.matmul %517, %297, %cst_146 {dimension_numbers = #tpu.dot_dimension_numbers<[1], [0], [0], [1], [0, 0, 1, 1], [], []>} : vector<2x64xf32>, vector<64x128xf32>, vector<2x128xf32> -> vector<2x128xf32>
    %519 = arith.addf %518, %301 : vector<2x128xf32>
    %520 = vector.extract_strided_slice %519 {offsets = [0, 0], sizes = [2, 32], strides = [1, 1]} : vector<2x128xf32> to vector<2x32xf32>
    %521 = arith.negf %520 : vector<2x32xf32>
    %522 = math.exp %521 : vector<2x32xf32>
    %cst_147 = arith.constant 1.000000e+00 : f32
    %523 = vector.broadcast %cst_147 : f32 to vector<2x32xf32>
    %524 = arith.addf %523, %522 : vector<2x32xf32>
    %525 = arith.divf %523, %524 : vector<2x32xf32>
    %526 = vector.extract_strided_slice %519 {offsets = [0, 32], sizes = [2, 32], strides = [1, 1]} : vector<2x128xf32> to vector<2x32xf32>
    %527 = arith.negf %526 : vector<2x32xf32>
    %528 = math.exp %527 : vector<2x32xf32>
    %cst_148 = arith.constant 1.000000e+00 : f32
    %529 = vector.broadcast %cst_148 : f32 to vector<2x32xf32>
    %530 = arith.addf %529, %528 : vector<2x32xf32>
    %531 = arith.divf %529, %530 : vector<2x32xf32>
    %532 = vector.extract_strided_slice %519 {offsets = [0, 64], sizes = [2, 32], strides = [1, 1]} : vector<2x128xf32> to vector<2x32xf32>
    %533 = math.tanh %532 : vector<2x32xf32>
    %534 = vector.extract_strided_slice %519 {offsets = [0, 96], sizes = [2, 32], strides = [1, 1]} : vector<2x128xf32> to vector<2x32xf32>
    %535 = arith.negf %534 : vector<2x32xf32>
    %536 = math.exp %535 : vector<2x32xf32>
    %cst_149 = arith.constant 1.000000e+00 : f32
    %537 = vector.broadcast %cst_149 : f32 to vector<2x32xf32>
    %538 = arith.addf %537, %536 : vector<2x32xf32>
    %539 = arith.divf %537, %538 : vector<2x32xf32>
    %540 = arith.mulf %531, %507 : vector<2x32xf32>
    %541 = arith.mulf %525, %533 : vector<2x32xf32>
    %542 = arith.addf %540, %541 : vector<2x32xf32>
    %543 = math.tanh %542 : vector<2x32xf32>
    %544 = arith.mulf %539, %543 : vector<2x32xf32>
    %545 = arith.index_cast %c6_i32_143 : i32 to index
    %c0_150 = arith.constant 0 : index
    %c0_151 = arith.constant 0 : index
    %546 = vector.load %arg4[%545, %c0_150, %c0_151] : memref<8x2x32xf32, #tpu.memory_space<vmem>>, vector<1x2x32xf32>
    %547 = vector.shape_cast %546 : vector<1x2x32xf32> to vector<2x32xf32>
    %548 = vector.shape_cast %544 : vector<2x32xf32> to vector<1x2x32xf32>
    tpu.vector_store %arg4[%545, %c0_150, %c0_151], %548 {strides = array<i32>} : memref<8x2x32xf32, #tpu.memory_space<vmem>>, vector<1x2x32xf32>,
    %c7_i32_152 = arith.constant 7 : i32
    %549 = arith.index_cast %c7_i32_152 : i32 to index
    %c0_153 = arith.constant 0 : index
    %c0_154 = arith.constant 0 : index
    %550 = vector.load %arg7[%549, %c0_153, %c0_154] : memref<8x2x32xf32, #tpu.memory_space<vmem>>, vector<1x2x32xf32>
    %551 = vector.shape_cast %550 : vector<1x2x32xf32> to vector<2x32xf32>
    %552 = tpu.concatenate %551, %544 in 1 : vector<2x32xf32>, vector<2x32xf32> -> vector<2x64xf32>
    %cst_155 = arith.constant dense<0.000000e+00> : vector<2x128xf32>
    %553 = tpu.matmul %552, %297, %cst_155 {dimension_numbers = #tpu.dot_dimension_numbers<[1], [0], [0], [1], [0, 0, 1, 1], [], []>} : vector<2x64xf32>, vector<64x128xf32>, vector<2x128xf32> -> vector<2x128xf32>
    %554 = arith.addf %553, %301 : vector<2x128xf32>
    %555 = vector.extract_strided_slice %554 {offsets = [0, 0], sizes = [2, 32], strides = [1, 1]} : vector<2x128xf32> to vector<2x32xf32>
    %556 = arith.negf %555 : vector<2x32xf32>
    %557 = math.exp %556 : vector<2x32xf32>
    %cst_156 = arith.constant 1.000000e+00 : f32
    %558 = vector.broadcast %cst_156 : f32 to vector<2x32xf32>
    %559 = arith.addf %558, %557 : vector<2x32xf32>
    %560 = arith.divf %558, %559 : vector<2x32xf32>
    %561 = vector.extract_strided_slice %554 {offsets = [0, 32], sizes = [2, 32], strides = [1, 1]} : vector<2x128xf32> to vector<2x32xf32>
    %562 = arith.negf %561 : vector<2x32xf32>
    %563 = math.exp %562 : vector<2x32xf32>
    %cst_157 = arith.constant 1.000000e+00 : f32
    %564 = vector.broadcast %cst_157 : f32 to vector<2x32xf32>
    %565 = arith.addf %564, %563 : vector<2x32xf32>
    %566 = arith.divf %564, %565 : vector<2x32xf32>
    %567 = vector.extract_strided_slice %554 {offsets = [0, 64], sizes = [2, 32], strides = [1, 1]} : vector<2x128xf32> to vector<2x32xf32>
    %568 = math.tanh %567 : vector<2x32xf32>
    %569 = vector.extract_strided_slice %554 {offsets = [0, 96], sizes = [2, 32], strides = [1, 1]} : vector<2x128xf32> to vector<2x32xf32>
    %570 = arith.negf %569 : vector<2x32xf32>
    %571 = math.exp %570 : vector<2x32xf32>
    %cst_158 = arith.constant 1.000000e+00 : f32
    %572 = vector.broadcast %cst_158 : f32 to vector<2x32xf32>
    %573 = arith.addf %572, %571 : vector<2x32xf32>
    %574 = arith.divf %572, %573 : vector<2x32xf32>
    %575 = arith.mulf %566, %542 : vector<2x32xf32>
    %576 = arith.mulf %560, %568 : vector<2x32xf32>
    %577 = arith.addf %575, %576 : vector<2x32xf32>
    %578 = math.tanh %577 : vector<2x32xf32>
    %579 = arith.mulf %574, %578 : vector<2x32xf32>
    %580 = arith.index_cast %c7_i32_152 : i32 to index
    %c0_159 = arith.constant 0 : index
    %c0_160 = arith.constant 0 : index
    %581 = vector.load %arg4[%580, %c0_159, %c0_160] : memref<8x2x32xf32, #tpu.memory_space<vmem>>, vector<1x2x32xf32>
    %582 = vector.shape_cast %581 : vector<1x2x32xf32> to vector<2x32xf32>
    %583 = vector.shape_cast %579 : vector<2x32xf32> to vector<1x2x32xf32>
    tpu.vector_store %arg4[%580, %c0_159, %c0_160], %583 {strides = array<i32>} : memref<8x2x32xf32, #tpu.memory_space<vmem>>, vector<1x2x32xf32>,
    %c8_i32_161 = arith.constant 8 : i32
    %c1_162 = arith.constant 1 : index
    %c0_163 = arith.constant 0 : index
    %c0_164 = arith.constant 0 : index
    %584 = vector.load %arg5[%c1_162, %c0_163, %c0_164] : memref<2x2x32xf32, #tpu.memory_space<vmem>>, vector<1x2x32xf32>
    %585 = vector.shape_cast %584 : vector<1x2x32xf32> to vector<2x32xf32>
    %586 = vector.shape_cast %579 : vector<2x32xf32> to vector<1x2x32xf32>
    tpu.vector_store %arg5[%c1_162, %c0_163, %c0_164], %586 {strides = array<i32>} : memref<2x2x32xf32, #tpu.memory_space<vmem>>, vector<1x2x32xf32>,
    %c1_165 = arith.constant 1 : index
    %c0_166 = arith.constant 0 : index
    %c0_167 = arith.constant 0 : index
    %587 = vector.load %arg6[%c1_165, %c0_166, %c0_167] : memref<2x2x32xf32, #tpu.memory_space<vmem>>, vector<1x2x32xf32>
    %588 = vector.shape_cast %587 : vector<1x2x32xf32> to vector<2x32xf32>
    %589 = vector.shape_cast %577 : vector<2x32xf32> to vector<1x2x32xf32>
    tpu.vector_store %arg6[%c1_165, %c0_166, %c0_167], %589 {strides = array<i32>} : memref<2x2x32xf32, #tpu.memory_space<vmem>>, vector<1x2x32xf32>,
    return
  }
  func.func @transform_0(%arg0: i32) -> (i32, i32, i32) {
    %c0_i32 = arith.constant 0 : i32
    %c0_i32_0 = arith.constant 0 : i32
    %c0_i32_1 = arith.constant 0 : i32
    %c0_i32_2 = arith.constant 0 : i32
    return %c0_i32, %c0_i32_0, %c0_i32_1 : i32, i32, i32
  }
  func.func @transform_1(%arg0: i32) -> (i32, i32, i32) {
    %c0_i32 = arith.constant 0 : i32
    %c0_i32_0 = arith.constant 0 : i32
    %c0_i32_1 = arith.constant 0 : i32
    %c0_i32_2 = arith.constant 0 : i32
    return %c0_i32, %c0_i32_0, %c0_i32_1 : i32, i32, i32
  }
  func.func @transform_2(%arg0: i32) -> (i32, i32, i32) {
    %c0_i32 = arith.constant 0 : i32
    %c0_i32_0 = arith.constant 0 : i32
    %c0_i32_1 = arith.constant 0 : i32
    %c0_i32_2 = arith.constant 0 : i32
    return %c0_i32, %c0_i32_0, %c0_i32_1 : i32, i32, i32
  }
  func.func @transform_3(%arg0: i32) -> (i32, i32, i32) {
    %c0_i32 = arith.constant 0 : i32
    %c0_i32_0 = arith.constant 0 : i32
    %c0_i32_1 = arith.constant 0 : i32
    %c0_i32_2 = arith.constant 0 : i32
    return %c0_i32, %c0_i32_0, %c0_i32_1 : i32, i32, i32
  }
  func.func @transform_4(%arg0: i32) -> (i32, i32, i32) {
    %c0_i32 = arith.constant 0 : i32
    %c0_i32_0 = arith.constant 0 : i32
    %c0_i32_1 = arith.constant 0 : i32
    %c0_i32_2 = arith.constant 0 : i32
    return %c0_i32, %c0_i32_0, %c0_i32_1 : i32, i32, i32
  }
  func.func @transform_5(%arg0: i32) -> (i32, i32, i32) {
    %c0_i32 = arith.constant 0 : i32
    %c0_i32_0 = arith.constant 0 : i32
    %c0_i32_1 = arith.constant 0 : i32
    %c0_i32_2 = arith.constant 0 : i32
    return %c0_i32, %c0_i32_0, %c0_i32_1 : i32, i32, i32
  }
}

</mosaic_0001>

<llo_original>
// kernel: rnn_model_forward.1
$region0: #{rnn_model_forward.1}
  #allocation0 [shape = 'u32[]', space=smem, size = 0x4, offset = 0x4, fixed_abs, tag = 'smem constant byte address 0x4 - core index']
  #allocation1 [shape = 'u32[144,128]{1,0:T(1,128)}', space=vmem, size = 0x12000, scoped, tag = 'internal scratch']
  #allocation2 [shape = 'f32[8,2,32]{2,1,0:T(2,128)}', space=vmem, size = 0x2000, scoped, tag = 'scratch operand']
  %s0 = inlined_call_operand.vmem [shape: f32[8,2,32], index: 0, kind: input, shape index: {}]
  %s1 = inlined_call_operand.vmem [shape: f32[2,64,128], index: 1, kind: input, shape index: {}]
  %s2 = inlined_call_operand.vmem [shape: f32[2,1,128], index: 2, kind: input, shape index: {}]
  %s3 = inlined_call_operand.vmem [shape: f32[8,2,32], index: 3, kind: output, shape index: {0}]
  %s4 = inlined_call_operand.hbm [shape: f32[2,2,32], index: 4, kind: output, shape index: {1}]
  %s5 = inlined_call_operand.hbm [shape: f32[2,2,32], index: 5, kind: output, shape index: {2}]
  %6 = xla_tuple %s3, %s4, %s5
  %s7 = sld [smem:[#allocation0]]
  $region38: #{rnn_model_forward.1} parent=0
    _
  %s9 = ssub.s32 1, %s7
  %s10 = scalar_select 0, %s9, %s7
  $region1: #{rnn_model_forward.1} parent=0
    #allocation3 [shape = 'u8[2048]{0}', space=vmem, size = 0x800, scoped, tag = 'output window, operand 1, single buffered']
    #allocation4 [shape = 's32[1]{0}', space=sflag, size = 0x4, scoped, tag = 'scoped memory for rnn_model_forward.1']
    #allocation5 [shape = 'u8[2048]{0}', space=vmem, size = 0x800, scoped, tag = 'output window, operand 2, single buffered']
    #allocation6 [shape = 's32[1]{0}', space=sflag, size = 0x4, scoped, tag = 'scoped memory for rnn_model_forward.1']
    %11 = vsyncpa [#allocation4], 0
    %12 = vsyncpa [#allocation6], 0
    // Predicated region
    $region2: #{rnn_model_forward.1} parent=1 // pred_check
      _
    $region3: #{rnn_model_forward.1} parent=1 // pred_check_branch
      %14 = sbr.rel (0) target = $region5
    $region4: #{rnn_model_forward.1} parent=1 // pred_region
      _
    $region5: #{rnn_model_forward.1} parent=1 // pred_fallthru
      _
    // Predicated region
    $region6: #{rnn_model_forward.1} parent=1 // pred_check
      _
    $region7: #{rnn_model_forward.1} parent=1 // pred_check_branch
      %16 = sbr.rel (0) target = $region9
    $region8: #{rnn_model_forward.1} parent=1 // pred_region
      _
    $region9: #{rnn_model_forward.1} parent=1 // pred_fallthru
      _
    // Predicated region
    $region10: #{rnn_model_forward.1} parent=1 // pred_check
      _
    $region11: #{rnn_model_forward.1} parent=1 // pred_check_branch
      %18 = sbr.rel (0) target = $region13
    $region12: #{rnn_model_forward.1} parent=1 // pred_region
      _
    $region13: #{rnn_model_forward.1} parent=1 // pred_fallthru
      _
    %v19 = vld [vmem:[%s0] sm:$0x3]
    %v20 = vld [vmem:[%s0 + $0x2] sm:$0x3]
    %v21 = vld [vmem:[%s0 + $0x4] sm:$0x3]
    %v22 = vld [vmem:[%s0 + $0x6] sm:$0x3]
    %v23 = vld [vmem:[%s0 + $0x8] sm:$0x3]
    %v24 = vld [vmem:[%s0 + $0xa] sm:$0x3]
    %v25 = vld [vmem:[%s0 + $0xc] sm:$0x3]
    %v26 = vld [vmem:[%s0 + $0xe] sm:$0x3]
    %vm27 = vcmask 254976
    %28 = vst.msk [vmem:[#allocation2] sm:$0x3] %vm27, %v19
    %29 = vst.msk [vmem:[#allocation2 + $0x2] sm:$0x3] %vm27, %v20
    %30 = vst.msk [vmem:[#allocation2 + $0x4] sm:$0x3] %vm27, %v21
    %31 = vst.msk [vmem:[#allocation2 + $0x6] sm:$0x3] %vm27, %v22
    %32 = vst.msk [vmem:[#allocation2 + $0x8] sm:$0x3] %vm27, %v23
    %33 = vst.msk [vmem:[#allocation2 + $0xa] sm:$0x3] %vm27, %v24
    %34 = vst.msk [vmem:[#allocation2 + $0xc] sm:$0x3] %vm27, %v25
    %35 = vst.msk [vmem:[#allocation2 + $0xe] sm:$0x3] %vm27, %v26
    %v36 = vld [vmem:[%s1] sm:$0xff]
    %v37 = vld [vmem:[%s1 + $0x8] sm:$0xff]
    %v38 = vld [vmem:[%s1 + $0x10] sm:$0xff]
    %v39 = vld [vmem:[%s1 + $0x18] sm:$0xff]
    %v40 = vld [vmem:[%s1 + $0x20] sm:$0xff]
    %v41 = vld [vmem:[%s1 + $0x28] sm:$0xff]
    %v42 = vld [vmem:[%s1 + $0x30] sm:$0xff]
    %v43 = vld [vmem:[%s1 + $0x38] sm:$0xff]
    %v44 = vld [vmem:[%s2] sm:$0x1]
    %v46 = vlaneseq
    %v47 = vshrl.u32 %v46, 7
    %v48 = vsub.s32 0, %v47
    %v49 = vrot.slane %v44, %v48
    %v51 = vld [vmem:[#allocation2] sm:$0x3]
    %vm52 = vcmask 261120
    %v53 = vsel %vm52, %v51, 0.0
    %vm54 = vcmask 523264
    %v56 = vsel %vm54, %v53, 0
    %58 = vmatprep.subr.mxu0 0.0
    %59 = vmatpush1.msra.mxu0 %v36
    %60 = vmatprep.subr.mxu0 0.0
    %61 = vmatpush1.msra.mxu0 %v37
    %62 = vmatprep.subr.mxu0 0.0
    %63 = vmatpush1.msra.mxu0 %v38
    %64 = vmatprep.subr.mxu0 0.0
    %65 = vmatpush1.msra.mxu0 %v39
    %66 = vmatprep.subr.mxu0 0.0
    %67 = vmatpush1.msra.mxu0 %v40
    %68 = vmatprep.subr.mxu0 0.0
    %69 = vmatpush1.msra.mxu0 %v41
    %70 = vmatprep.subr.mxu0 0.0
    %71 = vmatpush1.msra.mxu0 %v42
    %72 = vmatprep.subr.mxu0 0.0
    %73 = vmatpush1.msra.mxu0 %v43
    %74 = vmatprep.subr.mxu0 0.0
    %75 = vmatpush1.msra.mxu0 0.0
    %76 = vmatprep.subr.mxu0 0.0
    %77 = vmatpush1.msra.mxu0 0.0
    %78 = vmatprep.subr.mxu0 0.0
    %79 = vmatpush1.msra.mxu0 0.0
    %80 = vmatprep.subr.mxu0 0.0
    %81 = vmatpush1.msra.mxu0 0.0
    %82 = vmatprep.subr.mxu0 0.0
    %83 = vmatpush1.msra.mxu0 0.0
    %84 = vmatprep.subr.mxu0 0.0
    %85 = vmatpush1.msra.mxu0 0.0
    %86 = vmatprep.subr.mxu0 0.0
    %87 = vmatpush1.msra.mxu0 0.0
    %88 = vmatprep.subr.mxu0 0.0
    %89 = vmatpush1.msra.mxu0 0.0
    %90 = vmatprep.subr.mxu0 0.0
    %91 = vmatpush1.msra.mxu0 0.0
    %92 = vmatprep.subr.mxu0 0.0
    %93 = vmatpush1.msra.mxu0 0.0
    %94 = vmatprep.subr.mxu0 0.0
    %95 = vmatpush1.msra.mxu0 0.0
    %96 = vmatprep.subr.mxu0 0.0
    %97 = vmatpush1.msra.mxu0 0.0
    %98 = vmatprep.subr.mxu0 0.0
    %99 = vmatpush1.msra.mxu0 0.0
    %100 = vmatprep.subr.mxu0 0.0
    %101 = vmatpush1.msra.mxu0 0.0
    %102 = vmatprep.subr.mxu0 0.0
    %103 = vmatpush1.msra.mxu0 0.0
    %104 = vmatprep.subr.mxu0 0.0
    %105 = vmatpush1.msra.mxu0 0.0
    %106 = vmatprep.subr.mxu0 0.0
    %107 = vmatpush1.msra.mxu0 0.0
    %108 = vmatprep.subr.mxu0 0.0
    %109 = vmatpush1.msra.mxu0 0.0
    %110 = vmatprep.subr.mxu0 0.0
    %111 = vmatpush1.msra.mxu0 0.0
    %112 = vmatprep.subr.mxu0 0.0
    %113 = vmatpush1.msra.mxu0 0.0
    %114 = vmatprep.subr.mxu0 0.0
    %115 = vmatpush1.msra.mxu0 0.0
    %116 = vmatprep.subr.mxu0 0.0
    %117 = vmatpush1.msra.mxu0 0.0
    %118 = vmatprep.subr.mxu0 0.0
    %119 = vmatpush1.msra.mxu0 0.0
    %120 = vmatprep.subr.mxu0 0.0
    %121 = vmatpush1.msra.mxu0 0.0
    %122 = vmatprep.mubr.f32.mxu0 0.0
    %123 = vmatmul.mubr.f32.gmra.mrb[0].mxu0 %v56
    %v124 = vpop.f32.mrb[0].mxu0
    %v125 = vadd.f32 %v49, %v124
    %v126 = vpop.f32.mrb[0].mxu0
    %127 = vdwg.mxu0
    %v128 = vxor.u32 %v125, 2147483648
    %v129 = vmul.f32 %v128, 1.442695
    %v130 = vpow.pop %v129
    %v131 = vadd.f32 %v130, 1.0
    %v132 = vrcp.pop %v131
    %v133 = vmul.f32 1.0, %v132
    %v134 = vtanh.pop %v125
    %v135 = vmul.f32 %v133, 0.0
    %137 = vrot.lane.b32.xlu0 %v134, 64
    %v138 = vpop.permute.xlu0 %137
    %v140 = vmul.f32 %v133, %v138
    %142 = vrot.lane.b32.xlu0 %v140, 32
    %v143 = vpop.permute.xlu0 %142
    %v145 = vadd.f32 %v135, %v143
    %v146 = vtanh.pop %v145
    %148 = vrot.lane.b32.xlu0 %v146, 64
    %v149 = vpop.permute.xlu0 %148
    %v151 = vmul.f32 %v133, %v149
    %153 = vrot.lane.b32.xlu0 %v151, 32
    %v154 = vpop.permute.xlu0 %153
    %156 = vst.msk [vmem:[#allocation2] sm:$0x3] %vm27, %v154
    %s157 = scalar_lea.vmem [#allocation2], 2
    %v158 = vld [vmem:[%s157] sm:$0x3]
    %159 = vrot.lane.b32.xlu0 %v151, 64
    %v160 = vpop.permute.xlu0 %159
    %v162 = vsel %vm52, %v158, %v160
    %v164 = vsel %vm54, %v162, 0
    %166 = vmatprep.subr.mxu0 0.0
    %167 = vmatpush1.msra.mxu0 %v36
    %168 = vmatprep.subr.mxu0 0.0
    %169 = vmatpush1.msra.mxu0 %v37
    %170 = vmatprep.subr.mxu0 0.0
    %171 = vmatpush1.msra.mxu0 %v38
    %172 = vmatprep.subr.mxu0 0.0
    %173 = vmatpush1.msra.mxu0 %v39
    %174 = vmatprep.subr.mxu0 0.0
    %175 = vmatpush1.msra.mxu0 %v40
    %176 = vmatprep.subr.mxu0 0.0
    %177 = vmatpush1.msra.mxu0 %v41
    %178 = vmatprep.subr.mxu0 0.0
    %179 = vmatpush1.msra.mxu0 %v42
    %180 = vmatprep.subr.mxu0 0.0
    %181 = vmatpush1.msra.mxu0 %v43
    %182 = vmatprep.subr.mxu0 0.0
    %183 = vmatpush1.msra.mxu0 0.0
    %184 = vmatprep.subr.mxu0 0.0
    %185 = vmatpush1.msra.mxu0 0.0
    %186 = vmatprep.subr.mxu0 0.0
    %187 = vmatpush1.msra.mxu0 0.0
    %188 = vmatprep.subr.mxu0 0.0
    %189 = vmatpush1.msra.mxu0 0.0
    %190 = vmatprep.subr.mxu0 0.0
    %191 = vmatpush1.msra.mxu0 0.0
    %192 = vmatprep.subr.mxu0 0.0
    %193 = vmatpush1.msra.mxu0 0.0
    %194 = vmatprep.subr.mxu0 0.0
    %195 = vmatpush1.msra.mxu0 0.0
    %196 = vmatprep.subr.mxu0 0.0
    %197 = vmatpush1.msra.mxu0 0.0
    %198 = vmatprep.subr.mxu0 0.0
    %199 = vmatpush1.msra.mxu0 0.0
    %200 = vmatprep.subr.mxu0 0.0
    %201 = vmatpush1.msra.mxu0 0.0
    %202 = vmatprep.subr.mxu0 0.0
    %203 = vmatpush1.msra.mxu0 0.0
    %204 = vmatprep.subr.mxu0 0.0
    %205 = vmatpush1.msra.mxu0 0.0
    %206 = vmatprep.subr.mxu0 0.0
    %207 = vmatpush1.msra.mxu0 0.0
    %208 = vmatprep.subr.mxu0 0.0
    %209 = vmatpush1.msra.mxu0 0.0
    %210 = vmatprep.subr.mxu0 0.0
    %211 = vmatpush1.msra.mxu0 0.0
    %212 = vmatprep.subr.mxu0 0.0
    %213 = vmatpush1.msra.mxu0 0.0
    %214 = vmatprep.subr.mxu0 0.0
    %215 = vmatpush1.msra.mxu0 0.0
    %216 = vmatprep.subr.mxu0 0.0
    %217 = vmatpush1.msra.mxu0 0.0
    %218 = vmatprep.subr.mxu0 0.0
    %219 = vmatpush1.msra.mxu0 0.0
    %220 = vmatprep.subr.mxu0 0.0
    %221 = vmatpush1.msra.mxu0 0.0
    %222 = vmatprep.subr.mxu0 0.0
    %223 = vmatpush1.msra.mxu0 0.0
    %224 = vmatprep.subr.mxu0 0.0
    %225 = vmatpush1.msra.mxu0 0.0
    %226 = vmatprep.subr.mxu0 0.0
    %227 = vmatpush1.msra.mxu0 0.0
    %228 = vmatprep.subr.mxu0 0.0
    %229 = vmatpush1.msra.mxu0 0.0
    %230 = vmatprep.mubr.f32.mxu0 0.0
    %231 = vmatmul.mubr.f32.gmra.mrb[0].mxu0 %v164
    %v232 = vpop.f32.mrb[0].mxu0
    %v233 = vadd.f32 %v49, %v232
    %v234 = vpop.f32.mrb[0].mxu0
    %235 = vdwg.mxu0
    %v236 = vxor.u32 %v233, 2147483648
    %v237 = vmul.f32 %v236, 1.442695
    %v238 = vpow.pop %v237
    %v239 = vadd.f32 %v238, 1.0
    %v240 = vrcp.pop %v239
    %v241 = vmul.f32 1.0, %v240
    %v242 = vtanh.pop %v233
    %v243 = vmul.f32 %v241, %v145
    %245 = vrot.lane.b32.xlu0 %v242, 64
    %v246 = vpop.permute.xlu0 %245
    %v248 = vmul.f32 %v241, %v246
    %250 = vrot.lane.b32.xlu0 %v248, 32
    %v251 = vpop.permute.xlu0 %250
    %v253 = vadd.f32 %v243, %v251
    %v254 = vtanh.pop %v253
    %256 = vrot.lane.b32.xlu0 %v254, 64
    %v257 = vpop.permute.xlu0 %256
    %v259 = vmul.f32 %v241, %v257
    %261 = vrot.lane.b32.xlu0 %v259, 32
    %v262 = vpop.permute.xlu0 %261
    %264 = vst.msk [vmem:[%s157] sm:$0x3] %vm27, %v262
    %s265 = scalar_lea.vmem [#allocation2], 4
    %v266 = vld [vmem:[%s265] sm:$0x3]
    %267 = vrot.lane.b32.xlu0 %v259, 64
    %v268 = vpop.permute.xlu0 %267
    %v270 = vsel %vm52, %v266, %v268
    %v272 = vsel %vm54, %v270, 0
    %274 = vmatprep.subr.mxu0 0.0
    %275 = vmatpush1.msra.mxu0 %v36
    %276 = vmatprep.subr.mxu0 0.0
    %277 = vmatpush1.msra.mxu0 %v37
    %278 = vmatprep.subr.mxu0 0.0
    %279 = vmatpush1.msra.mxu0 %v38
    %280 = vmatprep.subr.mxu0 0.0
    %281 = vmatpush1.msra.mxu0 %v39
    %282 = vmatprep.subr.mxu0 0.0
    %283 = vmatpush1.msra.mxu0 %v40
    %284 = vmatprep.subr.mxu0 0.0
    %285 = vmatpush1.msra.mxu0 %v41
    %286 = vmatprep.subr.mxu0 0.0
    %287 = vmatpush1.msra.mxu0 %v42
    %288 = vmatprep.subr.mxu0 0.0
    %289 = vmatpush1.msra.mxu0 %v43
    %290 = vmatprep.subr.mxu0 0.0
    %291 = vmatpush1.msra.mxu0 0.0
    %292 = vmatprep.subr.mxu0 0.0
    %293 = vmatpush1.msra.mxu0 0.0
    %294 = vmatprep.subr.mxu0 0.0
    %295 = vmatpush1.msra.mxu0 0.0
    %296 = vmatprep.subr.mxu0 0.0
    %297 = vmatpush1.msra.mxu0 0.0
    %298 = vmatprep.subr.mxu0 0.0
    %299 = vmatpush1.msra.mxu0 0.0
    %300 = vmatprep.subr.mxu0 0.0
    %301 = vmatpush1.msra.mxu0 0.0
    %302 = vmatprep.subr.mxu0 0.0
    %303 = vmatpush1.msra.mxu0 0.0
    %304 = vmatprep.subr.mxu0 0.0
    %305 = vmatpush1.msra.mxu0 0.0
    %306 = vmatprep.subr.mxu0 0.0
    %307 = vmatpush1.msra.mxu0 0.0
    %308 = vmatprep.subr.mxu0 0.0
    %309 = vmatpush1.msra.mxu0 0.0
    %310 = vmatprep.subr.mxu0 0.0
    %311 = vmatpush1.msra.mxu0 0.0
    %312 = vmatprep.subr.mxu0 0.0
    %313 = vmatpush1.msra.mxu0 0.0
    %314 = vmatprep.subr.mxu0 0.0
    %315 = vmatpush1.msra.mxu0 0.0
    %316 = vmatprep.subr.mxu0 0.0
    %317 = vmatpush1.msra.mxu0 0.0
    %318 = vmatprep.subr.mxu0 0.0
    %319 = vmatpush1.msra.mxu0 0.0
    %320 = vmatprep.subr.mxu0 0.0
    %321 = vmatpush1.msra.mxu0 0.0
    %322 = vmatprep.subr.mxu0 0.0
    %323 = vmatpush1.msra.mxu0 0.0
    %324 = vmatprep.subr.mxu0 0.0
    %325 = vmatpush1.msra.mxu0 0.0
    %326 = vmatprep.subr.mxu0 0.0
    %327 = vmatpush1.msra.mxu0 0.0
    %328 = vmatprep.subr.mxu0 0.0
    %329 = vmatpush1.msra.mxu0 0.0
    %330 = vmatprep.subr.mxu0 0.0
    %331 = vmatpush1.msra.mxu0 0.0
    %332 = vmatprep.subr.mxu0 0.0
    %333 = vmatpush1.msra.mxu0 0.0
    %334 = vmatprep.subr.mxu0 0.0
    %335 = vmatpush1.msra.mxu0 0.0
    %336 = vmatprep.subr.mxu0 0.0
    %337 = vmatpush1.msra.mxu0 0.0
    %338 = vmatprep.mubr.f32.mxu0 0.0
    %339 = vmatmul.mubr.f32.gmra.mrb[0].mxu0 %v272
    %v340 = vpop.f32.mrb[0].mxu0
    %v341 = vadd.f32 %v49, %v340
    %v342 = vpop.f32.mrb[0].mxu0
    %343 = vdwg.mxu0
    %v344 = vxor.u32 %v341, 2147483648
    %v345 = vmul.f32 %v344, 1.442695
    %v346 = vpow.pop %v345
    %v347 = vadd.f32 %v346, 1.0
    %v348 = vrcp.pop %v347
    %v349 = vmul.f32 1.0, %v348
    %v350 = vtanh.pop %v341
    %v351 = vmul.f32 %v349, %v253
    %353 = vrot.lane.b32.xlu0 %v350, 64
    %v354 = vpop.permute.xlu0 %353
    %v356 = vmul.f32 %v349, %v354
    %358 = vrot.lane.b32.xlu0 %v356, 32
    %v359 = vpop.permute.xlu0 %358
    %v361 = vadd.f32 %v351, %v359
    %v362 = vtanh.pop %v361
    %364 = vrot.lane.b32.xlu0 %v362, 64
    %v365 = vpop.permute.xlu0 %364
    %v367 = vmul.f32 %v349, %v365
    %369 = vrot.lane.b32.xlu0 %v367, 32
    %v370 = vpop.permute.xlu0 %369
    %372 = vst.msk [vmem:[%s265] sm:$0x3] %vm27, %v370
    %s373 = scalar_lea.vmem [#allocation2], 6
    %v374 = vld [vmem:[%s373] sm:$0x3]
    %375 = vrot.lane.b32.xlu0 %v367, 64
    %v376 = vpop.permute.xlu0 %375
    %v378 = vsel %vm52, %v374, %v376
    %v380 = vsel %vm54, %v378, 0
    %382 = vmatprep.subr.mxu0 0.0
    %383 = vmatpush1.msra.mxu0 %v36
    %384 = vmatprep.subr.mxu0 0.0
    %385 = vmatpush1.msra.mxu0 %v37
    %386 = vmatprep.subr.mxu0 0.0
    %387 = vmatpush1.msra.mxu0 %v38
    %388 = vmatprep.subr.mxu0 0.0
    %389 = vmatpush1.msra.mxu0 %v39
    %390 = vmatprep.subr.mxu0 0.0
    %391 = vmatpush1.msra.mxu0 %v40
    %392 = vmatprep.subr.mxu0 0.0
    %393 = vmatpush1.msra.mxu0 %v41
    %394 = vmatprep.subr.mxu0 0.0
    %395 = vmatpush1.msra.mxu0 %v42
    %396 = vmatprep.subr.mxu0 0.0
    %397 = vmatpush1.msra.mxu0 %v43
    %398 = vmatprep.subr.mxu0 0.0
    %399 = vmatpush1.msra.mxu0 0.0
    %400 = vmatprep.subr.mxu0 0.0
    %401 = vmatpush1.msra.mxu0 0.0
    %402 = vmatprep.subr.mxu0 0.0
    %403 = vmatpush1.msra.mxu0 0.0
    %404 = vmatprep.subr.mxu0 0.0
    %405 = vmatpush1.msra.mxu0 0.0
    %406 = vmatprep.subr.mxu0 0.0
    %407 = vmatpush1.msra.mxu0 0.0
    %408 = vmatprep.subr.mxu0 0.0
    %409 = vmatpush1.msra.mxu0 0.0
    %410 = vmatprep.subr.mxu0 0.0
    %411 = vmatpush1.msra.mxu0 0.0
    %412 = vmatprep.subr.mxu0 0.0
    %413 = vmatpush1.msra.mxu0 0.0
    %414 = vmatprep.subr.mxu0 0.0
    %415 = vmatpush1.msra.mxu0 0.0
    %416 = vmatprep.subr.mxu0 0.0
    %417 = vmatpush1.msra.mxu0 0.0
    %418 = vmatprep.subr.mxu0 0.0
    %419 = vmatpush1.msra.mxu0 0.0
    %420 = vmatprep.subr.mxu0 0.0
    %421 = vmatpush1.msra.mxu0 0.0
    %422 = vmatprep.subr.mxu0 0.0
    %423 = vmatpush1.msra.mxu0 0.0
    %424 = vmatprep.subr.mxu0 0.0
    %425 = vmatpush1.msra.mxu0 0.0
    %426 = vmatprep.subr.mxu0 0.0
    %427 = vmatpush1.msra.mxu0 0.0
    %428 = vmatprep.subr.mxu0 0.0
    %429 = vmatpush1.msra.mxu0 0.0
    %430 = vmatprep.subr.mxu0 0.0
    %431 = vmatpush1.msra.mxu0 0.0
    %432 = vmatprep.subr.mxu0 0.0
    %433 = vmatpush1.msra.mxu0 0.0
    %434 = vmatprep.subr.mxu0 0.0
    %435 = vmatpush1.msra.mxu0 0.0
    %436 = vmatprep.subr.mxu0 0.0
    %437 = vmatpush1.msra.mxu0 0.0
    %438 = vmatprep.subr.mxu0 0.0
    %439 = vmatpush1.msra.mxu0 0.0
    %440 = vmatprep.subr.mxu0 0.0
    %441 = vmatpush1.msra.mxu0 0.0
    %442 = vmatprep.subr.mxu0 0.0
    %443 = vmatpush1.msra.mxu0 0.0
    %444 = vmatprep.subr.mxu0 0.0
    %445 = vmatpush1.msra.mxu0 0.0
    %446 = vmatprep.mubr.f32.mxu0 0.0
    %447 = vmatmul.mubr.f32.gmra.mrb[0].mxu0 %v380
    %v448 = vpop.f32.mrb[0].mxu0
    %v449 = vadd.f32 %v49, %v448
    %v450 = vpop.f32.mrb[0].mxu0
    %451 = vdwg.mxu0
    %v452 = vxor.u32 %v449, 2147483648
    %v453 = vmul.f32 %v452, 1.442695
    %v454 = vpow.pop %v453
    %v455 = vadd.f32 %v454, 1.0
    %v456 = vrcp.pop %v455
    %v457 = vmul.f32 1.0, %v456
    %v458 = vtanh.pop %v449
    %v459 = vmul.f32 %v457, %v361
    %461 = vrot.lane.b32.xlu0 %v458, 64
    %v462 = vpop.permute.xlu0 %461
    %v464 = vmul.f32 %v457, %v462
    %466 = vrot.lane.b32.xlu0 %v464, 32
    %v467 = vpop.permute.xlu0 %466
    %v469 = vadd.f32 %v459, %v467
    %v470 = vtanh.pop %v469
    %472 = vrot.lane.b32.xlu0 %v470, 64
    %v473 = vpop.permute.xlu0 %472
    %v475 = vmul.f32 %v457, %v473
    %477 = vrot.lane.b32.xlu0 %v475, 32
    %v478 = vpop.permute.xlu0 %477
    %480 = vst.msk [vmem:[%s373] sm:$0x3] %vm27, %v478
    %s481 = scalar_lea.vmem [#allocation2], 8
    %v482 = vld [vmem:[%s481] sm:$0x3]
    %483 = vrot.lane.b32.xlu0 %v475, 64
    %v484 = vpop.permute.xlu0 %483
    %v486 = vsel %vm52, %v482, %v484
    %v488 = vsel %vm54, %v486, 0
    %490 = vmatprep.subr.mxu0 0.0
    %491 = vmatpush1.msra.mxu0 %v36
    %492 = vmatprep.subr.mxu0 0.0
    %493 = vmatpush1.msra.mxu0 %v37
    %494 = vmatprep.subr.mxu0 0.0
    %495 = vmatpush1.msra.mxu0 %v38
    %496 = vmatprep.subr.mxu0 0.0
    %497 = vmatpush1.msra.mxu0 %v39
    %498 = vmatprep.subr.mxu0 0.0
    %499 = vmatpush1.msra.mxu0 %v40
    %500 = vmatprep.subr.mxu0 0.0
    %501 = vmatpush1.msra.mxu0 %v41
    %502 = vmatprep.subr.mxu0 0.0
    %503 = vmatpush1.msra.mxu0 %v42
    %504 = vmatprep.subr.mxu0 0.0
    %505 = vmatpush1.msra.mxu0 %v43
    %506 = vmatprep.subr.mxu0 0.0
    %507 = vmatpush1.msra.mxu0 0.0
    %508 = vmatprep.subr.mxu0 0.0
    %509 = vmatpush1.msra.mxu0 0.0
    %510 = vmatprep.subr.mxu0 0.0
    %511 = vmatpush1.msra.mxu0 0.0
    %512 = vmatprep.subr.mxu0 0.0
    %513 = vmatpush1.msra.mxu0 0.0
    %514 = vmatprep.subr.mxu0 0.0
    %515 = vmatpush1.msra.mxu0 0.0
    %516 = vmatprep.subr.mxu0 0.0
    %517 = vmatpush1.msra.mxu0 0.0
    %518 = vmatprep.subr.mxu0 0.0
    %519 = vmatpush1.msra.mxu0 0.0
    %520 = vmatprep.subr.mxu0 0.0
    %521 = vmatpush1.msra.mxu0 0.0
    %522 = vmatprep.subr.mxu0 0.0
    %523 = vmatpush1.msra.mxu0 0.0
    %524 = vmatprep.subr.mxu0 0.0
    %525 = vmatpush1.msra.mxu0 0.0
    %526 = vmatprep.subr.mxu0 0.0
    %527 = vmatpush1.msra.mxu0 0.0
    %528 = vmatprep.subr.mxu0 0.0
    %529 = vmatpush1.msra.mxu0 0.0
    %530 = vmatprep.subr.mxu0 0.0
    %531 = vmatpush1.msra.mxu0 0.0
    %532 = vmatprep.subr.mxu0 0.0
    %533 = vmatpush1.msra.mxu0 0.0
    %534 = vmatprep.subr.mxu0 0.0
    %535 = vmatpush1.msra.mxu0 0.0
    %536 = vmatprep.subr.mxu0 0.0
    %537 = vmatpush1.msra.mxu0 0.0
    %538 = vmatprep.subr.mxu0 0.0
    %539 = vmatpush1.msra.mxu0 0.0
    %540 = vmatprep.subr.mxu0 0.0
    %541 = vmatpush1.msra.mxu0 0.0
    %542 = vmatprep.subr.mxu0 0.0
    %543 = vmatpush1.msra.mxu0 0.0
    %544 = vmatprep.subr.mxu0 0.0
    %545 = vmatpush1.msra.mxu0 0.0
    %546 = vmatprep.subr.mxu0 0.0
    %547 = vmatpush1.msra.mxu0 0.0
    %548 = vmatprep.subr.mxu0 0.0
    %549 = vmatpush1.msra.mxu0 0.0
    %550 = vmatprep.subr.mxu0 0.0
    %551 = vmatpush1.msra.mxu0 0.0
    %552 = vmatprep.subr.mxu0 0.0
    %553 = vmatpush1.msra.mxu0 0.0
    %554 = vmatprep.mubr.f32.mxu0 0.0
    %555 = vmatmul.mubr.f32.gmra.mrb[0].mxu0 %v488
    %v556 = vpop.f32.mrb[0].mxu0
    %v557 = vadd.f32 %v49, %v556
    %v558 = vpop.f32.mrb[0].mxu0
    %559 = vdwg.mxu0
    %v560 = vxor.u32 %v557, 2147483648
    %v561 = vmul.f32 %v560, 1.442695
    %v562 = vpow.pop %v561
    %v563 = vadd.f32 %v562, 1.0
    %v564 = vrcp.pop %v563
    %v565 = vmul.f32 1.0, %v564
    %v566 = vtanh.pop %v557
    %v567 = vmul.f32 %v565, %v469
    %569 = vrot.lane.b32.xlu0 %v566, 64
    %v570 = vpop.permute.xlu0 %569
    %v572 = vmul.f32 %v565, %v570
    %574 = vrot.lane.b32.xlu0 %v572, 32
    %v575 = vpop.permute.xlu0 %574
    %v577 = vadd.f32 %v567, %v575
    %v578 = vtanh.pop %v577
    %580 = vrot.lane.b32.xlu0 %v578, 64
    %v581 = vpop.permute.xlu0 %580
    %v583 = vmul.f32 %v565, %v581
    %585 = vrot.lane.b32.xlu0 %v583, 32
    %v586 = vpop.permute.xlu0 %585
    %588 = vst.msk [vmem:[%s481] sm:$0x3] %vm27, %v586
    %s589 = scalar_lea.vmem [#allocation2], 10
    %v590 = vld [vmem:[%s589] sm:$0x3]
    %591 = vrot.lane.b32.xlu0 %v583, 64
    %v592 = vpop.permute.xlu0 %591
    %v594 = vsel %vm52, %v590, %v592
    %v596 = vsel %vm54, %v594, 0
    %598 = vmatprep.subr.mxu0 0.0
    %599 = vmatpush1.msra.mxu0 %v36
    %600 = vmatprep.subr.mxu0 0.0
    %601 = vmatpush1.msra.mxu0 %v37
    %602 = vmatprep.subr.mxu0 0.0
    %603 = vmatpush1.msra.mxu0 %v38
    %604 = vmatprep.subr.mxu0 0.0
    %605 = vmatpush1.msra.mxu0 %v39
    %606 = vmatprep.subr.mxu0 0.0
    %607 = vmatpush1.msra.mxu0 %v40
    %608 = vmatprep.subr.mxu0 0.0
    %609 = vmatpush1.msra.mxu0 %v41
    %610 = vmatprep.subr.mxu0 0.0
    %611 = vmatpush1.msra.mxu0 %v42
    %612 = vmatprep.subr.mxu0 0.0
    %613 = vmatpush1.msra.mxu0 %v43
    %614 = vmatprep.subr.mxu0 0.0
    %615 = vmatpush1.msra.mxu0 0.0
    %616 = vmatprep.subr.mxu0 0.0
    %617 = vmatpush1.msra.mxu0 0.0
    %618 = vmatprep.subr.mxu0 0.0
    %619 = vmatpush1.msra.mxu0 0.0
    %620 = vmatprep.subr.mxu0 0.0
    %621 = vmatpush1.msra.mxu0 0.0
    %622 = vmatprep.subr.mxu0 0.0
    %623 = vmatpush1.msra.mxu0 0.0
    %624 = vmatprep.subr.mxu0 0.0
    %625 = vmatpush1.msra.mxu0 0.0
    %626 = vmatprep.subr.mxu0 0.0
    %627 = vmatpush1.msra.mxu0 0.0
    %628 = vmatprep.subr.mxu0 0.0
    %629 = vmatpush1.msra.mxu0 0.0
    %630 = vmatprep.subr.mxu0 0.0
    %631 = vmatpush1.msra.mxu0 0.0
    %632 = vmatprep.subr.mxu0 0.0
    %633 = vmatpush1.msra.mxu0 0.0
    %634 = vmatprep.subr.mxu0 0.0
    %635 = vmatpush1.msra.mxu0 0.0
    %636 = vmatprep.subr.mxu0 0.0
    %637 = vmatpush1.msra.mxu0 0.0
    %638 = vmatprep.subr.mxu0 0.0
    %639 = vmatpush1.msra.mxu0 0.0
    %640 = vmatprep.subr.mxu0 0.0
    %641 = vmatpush1.msra.mxu0 0.0
    %642 = vmatprep.subr.mxu0 0.0
    %643 = vmatpush1.msra.mxu0 0.0
    %644 = vmatprep.subr.mxu0 0.0
    %645 = vmatpush1.msra.mxu0 0.0
    %646 = vmatprep.subr.mxu0 0.0
    %647 = vmatpush1.msra.mxu0 0.0
    %648 = vmatprep.subr.mxu0 0.0
    %649 = vmatpush1.msra.mxu0 0.0
    %650 = vmatprep.subr.mxu0 0.0
    %651 = vmatpush1.msra.mxu0 0.0
    %652 = vmatprep.subr.mxu0 0.0
    %653 = vmatpush1.msra.mxu0 0.0
    %654 = vmatprep.subr.mxu0 0.0
    %655 = vmatpush1.msra.mxu0 0.0
    %656 = vmatprep.subr.mxu0 0.0
    %657 = vmatpush1.msra.mxu0 0.0
    %658 = vmatprep.subr.mxu0 0.0
    %659 = vmatpush1.msra.mxu0 0.0
    %660 = vmatprep.subr.mxu0 0.0
    %661 = vmatpush1.msra.mxu0 0.0
    %662 = vmatprep.mubr.f32.mxu0 0.0
    %663 = vmatmul.mubr.f32.gmra.mrb[0].mxu0 %v596
    %v664 = vpop.f32.mrb[0].mxu0
    %v665 = vadd.f32 %v49, %v664
    %v666 = vpop.f32.mrb[0].mxu0
    %667 = vdwg.mxu0
    %v668 = vxor.u32 %v665, 2147483648
    %v669 = vmul.f32 %v668, 1.442695
    %v670 = vpow.pop %v669
    %v671 = vadd.f32 %v670, 1.0
    %v672 = vrcp.pop %v671
    %v673 = vmul.f32 1.0, %v672
    %v674 = vtanh.pop %v665
    %v675 = vmul.f32 %v673, %v577
    %677 = vrot.lane.b32.xlu0 %v674, 64
    %v678 = vpop.permute.xlu0 %677
    %v680 = vmul.f32 %v673, %v678
    %682 = vrot.lane.b32.xlu0 %v680, 32
    %v683 = vpop.permute.xlu0 %682
    %v685 = vadd.f32 %v675, %v683
    %v686 = vtanh.pop %v685
    %688 = vrot.lane.b32.xlu0 %v686, 64
    %v689 = vpop.permute.xlu0 %688
    %v691 = vmul.f32 %v673, %v689
    %693 = vrot.lane.b32.xlu0 %v691, 32
    %v694 = vpop.permute.xlu0 %693
    %696 = vst.msk [vmem:[%s589] sm:$0x3] %vm27, %v694
    %s697 = scalar_lea.vmem [#allocation2], 12
    %v698 = vld [vmem:[%s697] sm:$0x3]
    %699 = vrot.lane.b32.xlu0 %v691, 64
    %v700 = vpop.permute.xlu0 %699
    %v702 = vsel %vm52, %v698, %v700
    %v704 = vsel %vm54, %v702, 0
    %706 = vmatprep.subr.mxu0 0.0
    %707 = vmatpush1.msra.mxu0 %v36
    %708 = vmatprep.subr.mxu0 0.0
    %709 = vmatpush1.msra.mxu0 %v37
    %710 = vmatprep.subr.mxu0 0.0
    %711 = vmatpush1.msra.mxu0 %v38
    %712 = vmatprep.subr.mxu0 0.0
    %713 = vmatpush1.msra.mxu0 %v39
    %714 = vmatprep.subr.mxu0 0.0
    %715 = vmatpush1.msra.mxu0 %v40
    %716 = vmatprep.subr.mxu0 0.0
    %717 = vmatpush1.msra.mxu0 %v41
    %718 = vmatprep.subr.mxu0 0.0
    %719 = vmatpush1.msra.mxu0 %v42
    %720 = vmatprep.subr.mxu0 0.0
    %721 = vmatpush1.msra.mxu0 %v43
    %722 = vmatprep.subr.mxu0 0.0
    %723 = vmatpush1.msra.mxu0 0.0
    %724 = vmatprep.subr.mxu0 0.0
    %725 = vmatpush1.msra.mxu0 0.0
    %726 = vmatprep.subr.mxu0 0.0
    %727 = vmatpush1.msra.mxu0 0.0
    %728 = vmatprep.subr.mxu0 0.0
    %729 = vmatpush1.msra.mxu0 0.0
    %730 = vmatprep.subr.mxu0 0.0
    %731 = vmatpush1.msra.mxu0 0.0
    %732 = vmatprep.subr.mxu0 0.0
    %733 = vmatpush1.msra.mxu0 0.0
    %734 = vmatprep.subr.mxu0 0.0
    %735 = vmatpush1.msra.mxu0 0.0
    %736 = vmatprep.subr.mxu0 0.0
    %737 = vmatpush1.msra.mxu0 0.0
    %738 = vmatprep.subr.mxu0 0.0
    %739 = vmatpush1.msra.mxu0 0.0
    %740 = vmatprep.subr.mxu0 0.0
    %741 = vmatpush1.msra.mxu0 0.0
    %742 = vmatprep.subr.mxu0 0.0
    %743 = vmatpush1.msra.mxu0 0.0
    %744 = vmatprep.subr.mxu0 0.0
    %745 = vmatpush1.msra.mxu0 0.0
    %746 = vmatprep.subr.mxu0 0.0
    %747 = vmatpush1.msra.mxu0 0.0
    %748 = vmatprep.subr.mxu0 0.0
    %749 = vmatpush1.msra.mxu0 0.0
    %750 = vmatprep.subr.mxu0 0.0
    %751 = vmatpush1.msra.mxu0 0.0
    %752 = vmatprep.subr.mxu0 0.0
    %753 = vmatpush1.msra.mxu0 0.0
    %754 = vmatprep.subr.mxu0 0.0
    %755 = vmatpush1.msra.mxu0 0.0
    %756 = vmatprep.subr.mxu0 0.0
    %757 = vmatpush1.msra.mxu0 0.0
    %758 = vmatprep.subr.mxu0 0.0
    %759 = vmatpush1.msra.mxu0 0.0
    %760 = vmatprep.subr.mxu0 0.0
    %761 = vmatpush1.msra.mxu0 0.0
    %762 = vmatprep.subr.mxu0 0.0
    %763 = vmatpush1.msra.mxu0 0.0
    %764 = vmatprep.subr.mxu0 0.0
    %765 = vmatpush1.msra.mxu0 0.0
    %766 = vmatprep.subr.mxu0 0.0
    %767 = vmatpush1.msra.mxu0 0.0
    %768 = vmatprep.subr.mxu0 0.0
    %769 = vmatpush1.msra.mxu0 0.0
    %770 = vmatprep.mubr.f32.mxu0 0.0
    %771 = vmatmul.mubr.f32.gmra.mrb[0].mxu0 %v704
    %v772 = vpop.f32.mrb[0].mxu0
    %v773 = vadd.f32 %v49, %v772
    %v774 = vpop.f32.mrb[0].mxu0
    %775 = vdwg.mxu0
    %v776 = vxor.u32 %v773, 2147483648
    %v777 = vmul.f32 %v776, 1.442695
    %v778 = vpow.pop %v777
    %v779 = vadd.f32 %v778, 1.0
    %v780 = vrcp.pop %v779
    %v781 = vmul.f32 1.0, %v780
    %v782 = vtanh.pop %v773
    %v783 = vmul.f32 %v781, %v685
    %785 = vrot.lane.b32.xlu0 %v782, 64
    %v786 = vpop.permute.xlu0 %785
    %v788 = vmul.f32 %v781, %v786
    %790 = vrot.lane.b32.xlu0 %v788, 32
    %v791 = vpop.permute.xlu0 %790
    %v793 = vadd.f32 %v783, %v791
    %v794 = vtanh.pop %v793
    %796 = vrot.lane.b32.xlu0 %v794, 64
    %v797 = vpop.permute.xlu0 %796
    %v799 = vmul.f32 %v781, %v797
    %801 = vrot.lane.b32.xlu0 %v799, 32
    %v802 = vpop.permute.xlu0 %801
    %804 = vst.msk [vmem:[%s697] sm:$0x3] %vm27, %v802
    %s805 = scalar_lea.vmem [#allocation2], 14
    %v806 = vld [vmem:[%s805] sm:$0x3]
    %807 = vrot.lane.b32.xlu0 %v799, 64
    %v808 = vpop.permute.xlu0 %807
    %v810 = vsel %vm52, %v806, %v808
    %v812 = vsel %vm54, %v810, 0
    %814 = vmatprep.subr.mxu0 0.0
    %815 = vmatpush1.msra.mxu0 %v36
    %816 = vmatprep.subr.mxu0 0.0
    %817 = vmatpush1.msra.mxu0 %v37
    %818 = vmatprep.subr.mxu0 0.0
    %819 = vmatpush1.msra.mxu0 %v38
    %820 = vmatprep.subr.mxu0 0.0
    %821 = vmatpush1.msra.mxu0 %v39
    %822 = vmatprep.subr.mxu0 0.0
    %823 = vmatpush1.msra.mxu0 %v40
    %824 = vmatprep.subr.mxu0 0.0
    %825 = vmatpush1.msra.mxu0 %v41
    %826 = vmatprep.subr.mxu0 0.0
    %827 = vmatpush1.msra.mxu0 %v42
    %828 = vmatprep.subr.mxu0 0.0
    %829 = vmatpush1.msra.mxu0 %v43
    %830 = vmatprep.subr.mxu0 0.0
    %831 = vmatpush1.msra.mxu0 0.0
    %832 = vmatprep.subr.mxu0 0.0
    %833 = vmatpush1.msra.mxu0 0.0
    %834 = vmatprep.subr.mxu0 0.0
    %835 = vmatpush1.msra.mxu0 0.0
    %836 = vmatprep.subr.mxu0 0.0
    %837 = vmatpush1.msra.mxu0 0.0
    %838 = vmatprep.subr.mxu0 0.0
    %839 = vmatpush1.msra.mxu0 0.0
    %840 = vmatprep.subr.mxu0 0.0
    %841 = vmatpush1.msra.mxu0 0.0
    %842 = vmatprep.subr.mxu0 0.0
    %843 = vmatpush1.msra.mxu0 0.0
    %844 = vmatprep.subr.mxu0 0.0
    %845 = vmatpush1.msra.mxu0 0.0
    %846 = vmatprep.subr.mxu0 0.0
    %847 = vmatpush1.msra.mxu0 0.0
    %848 = vmatprep.subr.mxu0 0.0
    %849 = vmatpush1.msra.mxu0 0.0
    %850 = vmatprep.subr.mxu0 0.0
    %851 = vmatpush1.msra.mxu0 0.0
    %852 = vmatprep.subr.mxu0 0.0
    %853 = vmatpush1.msra.mxu0 0.0
    %854 = vmatprep.subr.mxu0 0.0
    %855 = vmatpush1.msra.mxu0 0.0
    %856 = vmatprep.subr.mxu0 0.0
    %857 = vmatpush1.msra.mxu0 0.0
    %858 = vmatprep.subr.mxu0 0.0
    %859 = vmatpush1.msra.mxu0 0.0
    %860 = vmatprep.subr.mxu0 0.0
    %861 = vmatpush1.msra.mxu0 0.0
    %862 = vmatprep.subr.mxu0 0.0
    %863 = vmatpush1.msra.mxu0 0.0
    %864 = vmatprep.subr.mxu0 0.0
    %865 = vmatpush1.msra.mxu0 0.0
    %866 = vmatprep.subr.mxu0 0.0
    %867 = vmatpush1.msra.mxu0 0.0
    %868 = vmatprep.subr.mxu0 0.0
    %869 = vmatpush1.msra.mxu0 0.0
    %870 = vmatprep.subr.mxu0 0.0
    %871 = vmatpush1.msra.mxu0 0.0
    %872 = vmatprep.subr.mxu0 0.0
    %873 = vmatpush1.msra.mxu0 0.0
    %874 = vmatprep.subr.mxu0 0.0
    %875 = vmatpush1.msra.mxu0 0.0
    %876 = vmatprep.subr.mxu0 0.0
    %877 = vmatpush1.msra.mxu0 0.0
    %878 = vmatprep.mubr.f32.mxu0 0.0
    %879 = vmatmul.mubr.f32.gmra.mrb[0].mxu0 %v812
    %v880 = vpop.f32.mrb[0].mxu0
    %v881 = vadd.f32 %v49, %v880
    %v882 = vpop.f32.mrb[0].mxu0
    %883 = vdwg.mxu0
    %v884 = vxor.u32 %v881, 2147483648
    %v885 = vmul.f32 %v884, 1.442695
    %v886 = vpow.pop %v885
    %v887 = vadd.f32 %v886, 1.0
    %v888 = vrcp.pop %v887
    %v889 = vmul.f32 1.0, %v888
    %v890 = vtanh.pop %v881
    %v891 = vmul.f32 %v889, %v793
    %893 = vrot.lane.b32.xlu0 %v890, 64
    %v894 = vpop.permute.xlu0 %893
    %v896 = vmul.f32 %v889, %v894
    %898 = vrot.lane.b32.xlu0 %v896, 32
    %v899 = vpop.permute.xlu0 %898
    %v901 = vadd.f32 %v891, %v899
    %v902 = vtanh.pop %v901
    %904 = vrot.lane.b32.xlu0 %v902, 64
    %v905 = vpop.permute.xlu0 %904
    %v907 = vmul.f32 %v889, %v905
    %909 = vrot.lane.b32.xlu0 %v907, 32
    %v910 = vpop.permute.xlu0 %909
    %912 = vst.msk [vmem:[%s805] sm:$0x3] %vm27, %v910
    %913 = vst.msk [vmem:[#allocation3] sm:$0x3] %vm27, %v910
    %915 = vrot.lane.b32.xlu0 %v901, 96
    %v916 = vpop.permute.xlu0 %915
    %918 = vst.msk [vmem:[#allocation5] sm:$0x3] %vm27, %v916
    %s919 = scalar_lea.vmem %s1, 64
    %v920 = vld [vmem:[%s919] sm:$0xff]
    %v921 = vld [vmem:[%s919 + $0x8] sm:$0xff]
    %v922 = vld [vmem:[%s919 + $0x10] sm:$0xff]
    %v923 = vld [vmem:[%s919 + $0x18] sm:$0xff]
    %v924 = vld [vmem:[%s919 + $0x20] sm:$0xff]
    %v925 = vld [vmem:[%s919 + $0x28] sm:$0xff]
    %v926 = vld [vmem:[%s919 + $0x30] sm:$0xff]
    %v927 = vld [vmem:[%s919 + $0x38] sm:$0xff]
    %s928 = scalar_lea.vmem %s2, 1
    %v929 = vld [vmem:[%s928] sm:$0x1]
    %v931 = vlaneseq
    %v932 = vshrl.u32 %v931, 7
    %v933 = vsub.s32 0, %v932
    %v934 = vrot.slane %v929, %v933
    %v936 = vld [vmem:[#allocation2] sm:$0x3]
    %v937 = vsel %vm52, %v936, 0.0
    %v939 = vsel %vm54, %v937, 0
    %941 = vmatprep.subr.mxu0 0.0
    %942 = vmatpush1.msra.mxu0 %v920
    %943 = vmatprep.subr.mxu0 0.0
    %944 = vmatpush1.msra.mxu0 %v921
    %945 = vmatprep.subr.mxu0 0.0
    %946 = vmatpush1.msra.mxu0 %v922
    %947 = vmatprep.subr.mxu0 0.0
    %948 = vmatpush1.msra.mxu0 %v923
    %949 = vmatprep.subr.mxu0 0.0
    %950 = vmatpush1.msra.mxu0 %v924
    %951 = vmatprep.subr.mxu0 0.0
    %952 = vmatpush1.msra.mxu0 %v925
    %953 = vmatprep.subr.mxu0 0.0
    %954 = vmatpush1.msra.mxu0 %v926
    %955 = vmatprep.subr.mxu0 0.0
    %956 = vmatpush1.msra.mxu0 %v927
    %957 = vmatprep.subr.mxu0 0.0
    %958 = vmatpush1.msra.mxu0 0.0
    %959 = vmatprep.subr.mxu0 0.0
    %960 = vmatpush1.msra.mxu0 0.0
    %961 = vmatprep.subr.mxu0 0.0
    %962 = vmatpush1.msra.mxu0 0.0
    %963 = vmatprep.subr.mxu0 0.0
    %964 = vmatpush1.msra.mxu0 0.0
    %965 = vmatprep.subr.mxu0 0.0
    %966 = vmatpush1.msra.mxu0 0.0
    %967 = vmatprep.subr.mxu0 0.0
    %968 = vmatpush1.msra.mxu0 0.0
    %969 = vmatprep.subr.mxu0 0.0
    %970 = vmatpush1.msra.mxu0 0.0
    %971 = vmatprep.subr.mxu0 0.0
    %972 = vmatpush1.msra.mxu0 0.0
    %973 = vmatprep.subr.mxu0 0.0
    %974 = vmatpush1.msra.mxu0 0.0
    %975 = vmatprep.subr.mxu0 0.0
    %976 = vmatpush1.msra.mxu0 0.0
    %977 = vmatprep.subr.mxu0 0.0
    %978 = vmatpush1.msra.mxu0 0.0
    %979 = vmatprep.subr.mxu0 0.0
    %980 = vmatpush1.msra.mxu0 0.0
    %981 = vmatprep.subr.mxu0 0.0
    %982 = vmatpush1.msra.mxu0 0.0
    %983 = vmatprep.subr.mxu0 0.0
    %984 = vmatpush1.msra.mxu0 0.0
    %985 = vmatprep.subr.mxu0 0.0
    %986 = vmatpush1.msra.mxu0 0.0
    %987 = vmatprep.subr.mxu0 0.0
    %988 = vmatpush1.msra.mxu0 0.0
    %989 = vmatprep.subr.mxu0 0.0
    %990 = vmatpush1.msra.mxu0 0.0
    %991 = vmatprep.subr.mxu0 0.0
    %992 = vmatpush1.msra.mxu0 0.0
    %993 = vmatprep.subr.mxu0 0.0
    %994 = vmatpush1.msra.mxu0 0.0
    %995 = vmatprep.subr.mxu0 0.0
    %996 = vmatpush1.msra.mxu0 0.0
    %997 = vmatprep.subr.mxu0 0.0
    %998 = vmatpush1.msra.mxu0 0.0
    %999 = vmatprep.subr.mxu0 0.0
    %1000 = vmatpush1.msra.mxu0 0.0
    %1001 = vmatprep.subr.mxu0 0.0
    %1002 = vmatpush1.msra.mxu0 0.0
    %1003 = vmatprep.subr.mxu0 0.0
    %1004 = vmatpush1.msra.mxu0 0.0
    %1005 = vmatprep.mubr.f32.mxu0 0.0
    %1006 = vmatmul.mubr.f32.gmra.mrb[0].mxu0 %v939
    %v1007 = vpop.f32.mrb[0].mxu0
    %v1008 = vadd.f32 %v934, %v1007
    %v1009 = vpop.f32.mrb[0].mxu0
    %1010 = vdwg.mxu0
    %v1011 = vxor.u32 %v1008, 2147483648
    %v1012 = vmul.f32 %v1011, 1.442695
    %v1013 = vpow.pop %v1012
    %v1014 = vadd.f32 %v1013, 1.0
    %v1015 = vrcp.pop %v1014
    %v1016 = vmul.f32 1.0, %v1015
    %v1017 = vtanh.pop %v1008
    %v1018 = vmul.f32 %v1016, 0.0
    %1020 = vrot.lane.b32.xlu0 %v1017, 64
    %v1021 = vpop.permute.xlu0 %1020
    %v1023 = vmul.f32 %v1016, %v1021
    %1025 = vrot.lane.b32.xlu0 %v1023, 32
    %v1026 = vpop.permute.xlu0 %1025
    %v1028 = vadd.f32 %v1018, %v1026
    %v1029 = vtanh.pop %v1028
    %1031 = vrot.lane.b32.xlu0 %v1029, 64
    %v1032 = vpop.permute.xlu0 %1031
    %v1034 = vmul.f32 %v1016, %v1032
    %1036 = vrot.lane.b32.xlu0 %v1034, 32
    %v1037 = vpop.permute.xlu0 %1036
    %1039 = vst.msk [vmem:[%s3] sm:$0x3] %vm27, %v1037
    %v1040 = vld [vmem:[%s157] sm:$0x3]
    %1041 = vrot.lane.b32.xlu0 %v1034, 64
    %v1042 = vpop.permute.xlu0 %1041
    %v1044 = vsel %vm52, %v1040, %v1042
    %v1046 = vsel %vm54, %v1044, 0
    %1048 = vmatprep.subr.mxu0 0.0
    %1049 = vmatpush1.msra.mxu0 %v920
    %1050 = vmatprep.subr.mxu0 0.0
    %1051 = vmatpush1.msra.mxu0 %v921
    %1052 = vmatprep.subr.mxu0 0.0
    %1053 = vmatpush1.msra.mxu0 %v922
    %1054 = vmatprep.subr.mxu0 0.0
    %1055 = vmatpush1.msra.mxu0 %v923
    %1056 = vmatprep.subr.mxu0 0.0
    %1057 = vmatpush1.msra.mxu0 %v924
    %1058 = vmatprep.subr.mxu0 0.0
    %1059 = vmatpush1.msra.mxu0 %v925
    %1060 = vmatprep.subr.mxu0 0.0
    %1061 = vmatpush1.msra.mxu0 %v926
    %1062 = vmatprep.subr.mxu0 0.0
    %1063 = vmatpush1.msra.mxu0 %v927
    %1064 = vmatprep.subr.mxu0 0.0
    %1065 = vmatpush1.msra.mxu0 0.0
    %1066 = vmatprep.subr.mxu0 0.0
    %1067 = vmatpush1.msra.mxu0 0.0
    %1068 = vmatprep.subr.mxu0 0.0
    %1069 = vmatpush1.msra.mxu0 0.0
    %1070 = vmatprep.subr.mxu0 0.0
    %1071 = vmatpush1.msra.mxu0 0.0
    %1072 = vmatprep.subr.mxu0 0.0
    %1073 = vmatpush1.msra.mxu0 0.0
    %1074 = vmatprep.subr.mxu0 0.0
    %1075 = vmatpush1.msra.mxu0 0.0
    %1076 = vmatprep.subr.mxu0 0.0
    %1077 = vmatpush1.msra.mxu0 0.0
    %1078 = vmatprep.subr.mxu0 0.0
    %1079 = vmatpush1.msra.mxu0 0.0
    %1080 = vmatprep.subr.mxu0 0.0
    %1081 = vmatpush1.msra.mxu0 0.0
    %1082 = vmatprep.subr.mxu0 0.0
    %1083 = vmatpush1.msra.mxu0 0.0
    %1084 = vmatprep.subr.mxu0 0.0
    %1085 = vmatpush1.msra.mxu0 0.0
    %1086 = vmatprep.subr.mxu0 0.0
    %1087 = vmatpush1.msra.mxu0 0.0
    %1088 = vmatprep.subr.mxu0 0.0
    %1089 = vmatpush1.msra.mxu0 0.0
    %1090 = vmatprep.subr.mxu0 0.0
    %1091 = vmatpush1.msra.mxu0 0.0
    %1092 = vmatprep.subr.mxu0 0.0
    %1093 = vmatpush1.msra.mxu0 0.0
    %1094 = vmatprep.subr.mxu0 0.0
    %1095 = vmatpush1.msra.mxu0 0.0
    %1096 = vmatprep.subr.mxu0 0.0
    %1097 = vmatpush1.msra.mxu0 0.0
    %1098 = vmatprep.subr.mxu0 0.0
    %1099 = vmatpush1.msra.mxu0 0.0
    %1100 = vmatprep.subr.mxu0 0.0
    %1101 = vmatpush1.msra.mxu0 0.0
    %1102 = vmatprep.subr.mxu0 0.0
    %1103 = vmatpush1.msra.mxu0 0.0
    %1104 = vmatprep.subr.mxu0 0.0
    %1105 = vmatpush1.msra.mxu0 0.0
    %1106 = vmatprep.subr.mxu0 0.0
    %1107 = vmatpush1.msra.mxu0 0.0
    %1108 = vmatprep.subr.mxu0 0.0
    %1109 = vmatpush1.msra.mxu0 0.0
    %1110 = vmatprep.subr.mxu0 0.0
    %1111 = vmatpush1.msra.mxu0 0.0
    %1112 = vmatprep.mubr.f32.mxu0 0.0
    %1113 = vmatmul.mubr.f32.gmra.mrb[0].mxu0 %v1046
    %v1114 = vpop.f32.mrb[0].mxu0
    %v1115 = vadd.f32 %v934, %v1114
    %v1116 = vpop.f32.mrb[0].mxu0
    %1117 = vdwg.mxu0
    %v1118 = vxor.u32 %v1115, 2147483648
    %v1119 = vmul.f32 %v1118, 1.442695
    %v1120 = vpow.pop %v1119
    %v1121 = vadd.f32 %v1120, 1.0
    %v1122 = vrcp.pop %v1121
    %v1123 = vmul.f32 1.0, %v1122
    %v1124 = vtanh.pop %v1115
    %v1125 = vmul.f32 %v1123, %v1028
    %1127 = vrot.lane.b32.xlu0 %v1124, 64
    %v1128 = vpop.permute.xlu0 %1127
    %v1130 = vmul.f32 %v1123, %v1128
    %1132 = vrot.lane.b32.xlu0 %v1130, 32
    %v1133 = vpop.permute.xlu0 %1132
    %v1135 = vadd.f32 %v1125, %v1133
    %v1136 = vtanh.pop %v1135
    %1138 = vrot.lane.b32.xlu0 %v1136, 64
    %v1139 = vpop.permute.xlu0 %1138
    %v1141 = vmul.f32 %v1123, %v1139
    %1143 = vrot.lane.b32.xlu0 %v1141, 32
    %v1144 = vpop.permute.xlu0 %1143
    %s1146 = scalar_lea.vmem %s3, 2
    %1147 = vst.msk [vmem:[%s1146] sm:$0x3] %vm27, %v1144
    %v1148 = vld [vmem:[%s265] sm:$0x3]
    %1149 = vrot.lane.b32.xlu0 %v1141, 64
    %v1150 = vpop.permute.xlu0 %1149
    %v1152 = vsel %vm52, %v1148, %v1150
    %v1154 = vsel %vm54, %v1152, 0
    %1156 = vmatprep.subr.mxu0 0.0
    %1157 = vmatpush1.msra.mxu0 %v920
    %1158 = vmatprep.subr.mxu0 0.0
    %1159 = vmatpush1.msra.mxu0 %v921
    %1160 = vmatprep.subr.mxu0 0.0
    %1161 = vmatpush1.msra.mxu0 %v922
    %1162 = vmatprep.subr.mxu0 0.0
    %1163 = vmatpush1.msra.mxu0 %v923
    %1164 = vmatprep.subr.mxu0 0.0
    %1165 = vmatpush1.msra.mxu0 %v924
    %1166 = vmatprep.subr.mxu0 0.0
    %1167 = vmatpush1.msra.mxu0 %v925
    %1168 = vmatprep.subr.mxu0 0.0
    %1169 = vmatpush1.msra.mxu0 %v926
    %1170 = vmatprep.subr.mxu0 0.0
    %1171 = vmatpush1.msra.mxu0 %v927
    %1172 = vmatprep.subr.mxu0 0.0
    %1173 = vmatpush1.msra.mxu0 0.0
    %1174 = vmatprep.subr.mxu0 0.0
    %1175 = vmatpush1.msra.mxu0 0.0
    %1176 = vmatprep.subr.mxu0 0.0
    %1177 = vmatpush1.msra.mxu0 0.0
    %1178 = vmatprep.subr.mxu0 0.0
    %1179 = vmatpush1.msra.mxu0 0.0
    %1180 = vmatprep.subr.mxu0 0.0
    %1181 = vmatpush1.msra.mxu0 0.0
    %1182 = vmatprep.subr.mxu0 0.0
    %1183 = vmatpush1.msra.mxu0 0.0
    %1184 = vmatprep.subr.mxu0 0.0
    %1185 = vmatpush1.msra.mxu0 0.0
    %1186 = vmatprep.subr.mxu0 0.0
    %1187 = vmatpush1.msra.mxu0 0.0
    %1188 = vmatprep.subr.mxu0 0.0
    %1189 = vmatpush1.msra.mxu0 0.0
    %1190 = vmatprep.subr.mxu0 0.0
    %1191 = vmatpush1.msra.mxu0 0.0
    %1192 = vmatprep.subr.mxu0 0.0
    %1193 = vmatpush1.msra.mxu0 0.0
    %1194 = vmatprep.subr.mxu0 0.0
    %1195 = vmatpush1.msra.mxu0 0.0
    %1196 = vmatprep.subr.mxu0 0.0
    %1197 = vmatpush1.msra.mxu0 0.0
    %1198 = vmatprep.subr.mxu0 0.0
    %1199 = vmatpush1.msra.mxu0 0.0
    %1200 = vmatprep.subr.mxu0 0.0
    %1201 = vmatpush1.msra.mxu0 0.0
    %1202 = vmatprep.subr.mxu0 0.0
    %1203 = vmatpush1.msra.mxu0 0.0
    %1204 = vmatprep.subr.mxu0 0.0
    %1205 = vmatpush1.msra.mxu0 0.0
    %1206 = vmatprep.subr.mxu0 0.0
    %1207 = vmatpush1.msra.mxu0 0.0
    %1208 = vmatprep.subr.mxu0 0.0
    %1209 = vmatpush1.msra.mxu0 0.0
    %1210 = vmatprep.subr.mxu0 0.0
    %1211 = vmatpush1.msra.mxu0 0.0
    %1212 = vmatprep.subr.mxu0 0.0
    %1213 = vmatpush1.msra.mxu0 0.0
    %1214 = vmatprep.subr.mxu0 0.0
    %1215 = vmatpush1.msra.mxu0 0.0
    %1216 = vmatprep.subr.mxu0 0.0
    %1217 = vmatpush1.msra.mxu0 0.0
    %1218 = vmatprep.subr.mxu0 0.0
    %1219 = vmatpush1.msra.mxu0 0.0
    %1220 = vmatprep.mubr.f32.mxu0 0.0
    %1221 = vmatmul.mubr.f32.gmra.mrb[0].mxu0 %v1154
    %v1222 = vpop.f32.mrb[0].mxu0
    %v1223 = vadd.f32 %v934, %v1222
    %v1224 = vpop.f32.mrb[0].mxu0
    %1225 = vdwg.mxu0
    %v1226 = vxor.u32 %v1223, 2147483648
    %v1227 = vmul.f32 %v1226, 1.442695
    %v1228 = vpow.pop %v1227
    %v1229 = vadd.f32 %v1228, 1.0
    %v1230 = vrcp.pop %v1229
    %v1231 = vmul.f32 1.0, %v1230
    %v1232 = vtanh.pop %v1223
    %v1233 = vmul.f32 %v1231, %v1135
    %1235 = vrot.lane.b32.xlu0 %v1232, 64
    %v1236 = vpop.permute.xlu0 %1235
    %v1238 = vmul.f32 %v1231, %v1236
    %1240 = vrot.lane.b32.xlu0 %v1238, 32
    %v1241 = vpop.permute.xlu0 %1240
    %v1243 = vadd.f32 %v1233, %v1241
    %v1244 = vtanh.pop %v1243
    %1246 = vrot.lane.b32.xlu0 %v1244, 64
    %v1247 = vpop.permute.xlu0 %1246
    %v1249 = vmul.f32 %v1231, %v1247
    %1251 = vrot.lane.b32.xlu0 %v1249, 32
    %v1252 = vpop.permute.xlu0 %1251
    %s1254 = scalar_lea.vmem %s3, 4
    %1255 = vst.msk [vmem:[%s1254] sm:$0x3] %vm27, %v1252
    %v1256 = vld [vmem:[%s373] sm:$0x3]
    %1257 = vrot.lane.b32.xlu0 %v1249, 64
    %v1258 = vpop.permute.xlu0 %1257
    %v1260 = vsel %vm52, %v1256, %v1258
    %v1262 = vsel %vm54, %v1260, 0
    %1264 = vmatprep.subr.mxu0 0.0
    %1265 = vmatpush1.msra.mxu0 %v920
    %1266 = vmatprep.subr.mxu0 0.0
    %1267 = vmatpush1.msra.mxu0 %v921
    %1268 = vmatprep.subr.mxu0 0.0
    %1269 = vmatpush1.msra.mxu0 %v922
    %1270 = vmatprep.subr.mxu0 0.0
    %1271 = vmatpush1.msra.mxu0 %v923
    %1272 = vmatprep.subr.mxu0 0.0
    %1273 = vmatpush1.msra.mxu0 %v924
    %1274 = vmatprep.subr.mxu0 0.0
    %1275 = vmatpush1.msra.mxu0 %v925
    %1276 = vmatprep.subr.mxu0 0.0
    %1277 = vmatpush1.msra.mxu0 %v926
    %1278 = vmatprep.subr.mxu0 0.0
    %1279 = vmatpush1.msra.mxu0 %v927
    %1280 = vmatprep.subr.mxu0 0.0
    %1281 = vmatpush1.msra.mxu0 0.0
    %1282 = vmatprep.subr.mxu0 0.0
    %1283 = vmatpush1.msra.mxu0 0.0
    %1284 = vmatprep.subr.mxu0 0.0
    %1285 = vmatpush1.msra.mxu0 0.0
    %1286 = vmatprep.subr.mxu0 0.0
    %1287 = vmatpush1.msra.mxu0 0.0
    %1288 = vmatprep.subr.mxu0 0.0
    %1289 = vmatpush1.msra.mxu0 0.0
    %1290 = vmatprep.subr.mxu0 0.0
    %1291 = vmatpush1.msra.mxu0 0.0
    %1292 = vmatprep.subr.mxu0 0.0
    %1293 = vmatpush1.msra.mxu0 0.0
    %1294 = vmatprep.subr.mxu0 0.0
    %1295 = vmatpush1.msra.mxu0 0.0
    %1296 = vmatprep.subr.mxu0 0.0
    %1297 = vmatpush1.msra.mxu0 0.0
    %1298 = vmatprep.subr.mxu0 0.0
    %1299 = vmatpush1.msra.mxu0 0.0
    %1300 = vmatprep.subr.mxu0 0.0
    %1301 = vmatpush1.msra.mxu0 0.0
    %1302 = vmatprep.subr.mxu0 0.0
    %1303 = vmatpush1.msra.mxu0 0.0
    %1304 = vmatprep.subr.mxu0 0.0
    %1305 = vmatpush1.msra.mxu0 0.0
    %1306 = vmatprep.subr.mxu0 0.0
    %1307 = vmatpush1.msra.mxu0 0.0
    %1308 = vmatprep.subr.mxu0 0.0
    %1309 = vmatpush1.msra.mxu0 0.0
    %1310 = vmatprep.subr.mxu0 0.0
    %1311 = vmatpush1.msra.mxu0 0.0
    %1312 = vmatprep.subr.mxu0 0.0
    %1313 = vmatpush1.msra.mxu0 0.0
    %1314 = vmatprep.subr.mxu0 0.0
    %1315 = vmatpush1.msra.mxu0 0.0
    %1316 = vmatprep.subr.mxu0 0.0
    %1317 = vmatpush1.msra.mxu0 0.0
    %1318 = vmatprep.subr.mxu0 0.0
    %1319 = vmatpush1.msra.mxu0 0.0
    %1320 = vmatprep.subr.mxu0 0.0
    %1321 = vmatpush1.msra.mxu0 0.0
    %1322 = vmatprep.subr.mxu0 0.0
    %1323 = vmatpush1.msra.mxu0 0.0
    %1324 = vmatprep.subr.mxu0 0.0
    %1325 = vmatpush1.msra.mxu0 0.0
    %1326 = vmatprep.subr.mxu0 0.0
    %1327 = vmatpush1.msra.mxu0 0.0
    %1328 = vmatprep.mubr.f32.mxu0 0.0
    %1329 = vmatmul.mubr.f32.gmra.mrb[0].mxu0 %v1262
    %v1330 = vpop.f32.mrb[0].mxu0
    %v1331 = vadd.f32 %v934, %v1330
    %v1332 = vpop.f32.mrb[0].mxu0
    %1333 = vdwg.mxu0
    %v1334 = vxor.u32 %v1331, 2147483648
    %v1335 = vmul.f32 %v1334, 1.442695
    %v1336 = vpow.pop %v1335
    %v1337 = vadd.f32 %v1336, 1.0
    %v1338 = vrcp.pop %v1337
    %v1339 = vmul.f32 1.0, %v1338
    %v1340 = vtanh.pop %v1331
    %v1341 = vmul.f32 %v1339, %v1243
    %1343 = vrot.lane.b32.xlu0 %v1340, 64
    %v1344 = vpop.permute.xlu0 %1343
    %v1346 = vmul.f32 %v1339, %v1344
    %1348 = vrot.lane.b32.xlu0 %v1346, 32
    %v1349 = vpop.permute.xlu0 %1348
    %v1351 = vadd.f32 %v1341, %v1349
    %v1352 = vtanh.pop %v1351
    %1354 = vrot.lane.b32.xlu0 %v1352, 64
    %v1355 = vpop.permute.xlu0 %1354
    %v1357 = vmul.f32 %v1339, %v1355
    %1359 = vrot.lane.b32.xlu0 %v1357, 32
    %v1360 = vpop.permute.xlu0 %1359
    %s1362 = scalar_lea.vmem %s3, 6
    %1363 = vst.msk [vmem:[%s1362] sm:$0x3] %vm27, %v1360
    %v1364 = vld [vmem:[%s481] sm:$0x3]
    %1365 = vrot.lane.b32.xlu0 %v1357, 64
    %v1366 = vpop.permute.xlu0 %1365
    %v1368 = vsel %vm52, %v1364, %v1366
    %v1370 = vsel %vm54, %v1368, 0
    %1372 = vmatprep.subr.mxu0 0.0
    %1373 = vmatpush1.msra.mxu0 %v920
    %1374 = vmatprep.subr.mxu0 0.0
    %1375 = vmatpush1.msra.mxu0 %v921
    %1376 = vmatprep.subr.mxu0 0.0
    %1377 = vmatpush1.msra.mxu0 %v922
    %1378 = vmatprep.subr.mxu0 0.0
    %1379 = vmatpush1.msra.mxu0 %v923
    %1380 = vmatprep.subr.mxu0 0.0
    %1381 = vmatpush1.msra.mxu0 %v924
    %1382 = vmatprep.subr.mxu0 0.0
    %1383 = vmatpush1.msra.mxu0 %v925
    %1384 = vmatprep.subr.mxu0 0.0
    %1385 = vmatpush1.msra.mxu0 %v926
    %1386 = vmatprep.subr.mxu0 0.0
    %1387 = vmatpush1.msra.mxu0 %v927
    %1388 = vmatprep.subr.mxu0 0.0
    %1389 = vmatpush1.msra.mxu0 0.0
    %1390 = vmatprep.subr.mxu0 0.0
    %1391 = vmatpush1.msra.mxu0 0.0
    %1392 = vmatprep.subr.mxu0 0.0
    %1393 = vmatpush1.msra.mxu0 0.0
    %1394 = vmatprep.subr.mxu0 0.0
    %1395 = vmatpush1.msra.mxu0 0.0
    %1396 = vmatprep.subr.mxu0 0.0
    %1397 = vmatpush1.msra.mxu0 0.0
    %1398 = vmatprep.subr.mxu0 0.0
    %1399 = vmatpush1.msra.mxu0 0.0
    %1400 = vmatprep.subr.mxu0 0.0
    %1401 = vmatpush1.msra.mxu0 0.0
    %1402 = vmatprep.subr.mxu0 0.0
    %1403 = vmatpush1.msra.mxu0 0.0
    %1404 = vmatprep.subr.mxu0 0.0
    %1405 = vmatpush1.msra.mxu0 0.0
    %1406 = vmatprep.subr.mxu0 0.0
    %1407 = vmatpush1.msra.mxu0 0.0
    %1408 = vmatprep.subr.mxu0 0.0
    %1409 = vmatpush1.msra.mxu0 0.0
    %1410 = vmatprep.subr.mxu0 0.0
    %1411 = vmatpush1.msra.mxu0 0.0
    %1412 = vmatprep.subr.mxu0 0.0
    %1413 = vmatpush1.msra.mxu0 0.0
    %1414 = vmatprep.subr.mxu0 0.0
    %1415 = vmatpush1.msra.mxu0 0.0
    %1416 = vmatprep.subr.mxu0 0.0
    %1417 = vmatpush1.msra.mxu0 0.0
    %1418 = vmatprep.subr.mxu0 0.0
    %1419 = vmatpush1.msra.mxu0 0.0
    %1420 = vmatprep.subr.mxu0 0.0
    %1421 = vmatpush1.msra.mxu0 0.0
    %1422 = vmatprep.subr.mxu0 0.0
    %1423 = vmatpush1.msra.mxu0 0.0
    %1424 = vmatprep.subr.mxu0 0.0
    %1425 = vmatpush1.msra.mxu0 0.0
    %1426 = vmatprep.subr.mxu0 0.0
    %1427 = vmatpush1.msra.mxu0 0.0
    %1428 = vmatprep.subr.mxu0 0.0
    %1429 = vmatpush1.msra.mxu0 0.0
    %1430 = vmatprep.subr.mxu0 0.0
    %1431 = vmatpush1.msra.mxu0 0.0
    %1432 = vmatprep.subr.mxu0 0.0
    %1433 = vmatpush1.msra.mxu0 0.0
    %1434 = vmatprep.subr.mxu0 0.0
    %1435 = vmatpush1.msra.mxu0 0.0
    %1436 = vmatprep.mubr.f32.mxu0 0.0
    %1437 = vmatmul.mubr.f32.gmra.mrb[0].mxu0 %v1370
    %v1438 = vpop.f32.mrb[0].mxu0
    %v1439 = vadd.f32 %v934, %v1438
    %v1440 = vpop.f32.mrb[0].mxu0
    %1441 = vdwg.mxu0
    %v1442 = vxor.u32 %v1439, 2147483648
    %v1443 = vmul.f32 %v1442, 1.442695
    %v1444 = vpow.pop %v1443
    %v1445 = vadd.f32 %v1444, 1.0
    %v1446 = vrcp.pop %v1445
    %v1447 = vmul.f32 1.0, %v1446
    %v1448 = vtanh.pop %v1439
    %v1449 = vmul.f32 %v1447, %v1351
    %1451 = vrot.lane.b32.xlu0 %v1448, 64
    %v1452 = vpop.permute.xlu0 %1451
    %v1454 = vmul.f32 %v1447, %v1452
    %1456 = vrot.lane.b32.xlu0 %v1454, 32
    %v1457 = vpop.permute.xlu0 %1456
    %v1459 = vadd.f32 %v1449, %v1457
    %v1460 = vtanh.pop %v1459
    %1462 = vrot.lane.b32.xlu0 %v1460, 64
    %v1463 = vpop.permute.xlu0 %1462
    %v1465 = vmul.f32 %v1447, %v1463
    %1467 = vrot.lane.b32.xlu0 %v1465, 32
    %v1468 = vpop.permute.xlu0 %1467
    %s1470 = scalar_lea.vmem %s3, 8
    %1471 = vst.msk [vmem:[%s1470] sm:$0x3] %vm27, %v1468
    %v1472 = vld [vmem:[%s589] sm:$0x3]
    %1473 = vrot.lane.b32.xlu0 %v1465, 64
    %v1474 = vpop.permute.xlu0 %1473
    %v1476 = vsel %vm52, %v1472, %v1474
    %v1478 = vsel %vm54, %v1476, 0
    %1480 = vmatprep.subr.mxu0 0.0
    %1481 = vmatpush1.msra.mxu0 %v920
    %1482 = vmatprep.subr.mxu0 0.0
    %1483 = vmatpush1.msra.mxu0 %v921
    %1484 = vmatprep.subr.mxu0 0.0
    %1485 = vmatpush1.msra.mxu0 %v922
    %1486 = vmatprep.subr.mxu0 0.0
    %1487 = vmatpush1.msra.mxu0 %v923
    %1488 = vmatprep.subr.mxu0 0.0
    %1489 = vmatpush1.msra.mxu0 %v924
    %1490 = vmatprep.subr.mxu0 0.0
    %1491 = vmatpush1.msra.mxu0 %v925
    %1492 = vmatprep.subr.mxu0 0.0
    %1493 = vmatpush1.msra.mxu0 %v926
    %1494 = vmatprep.subr.mxu0 0.0
    %1495 = vmatpush1.msra.mxu0 %v927
    %1496 = vmatprep.subr.mxu0 0.0
    %1497 = vmatpush1.msra.mxu0 0.0
    %1498 = vmatprep.subr.mxu0 0.0
    %1499 = vmatpush1.msra.mxu0 0.0
    %1500 = vmatprep.subr.mxu0 0.0
    %1501 = vmatpush1.msra.mxu0 0.0
    %1502 = vmatprep.subr.mxu0 0.0
    %1503 = vmatpush1.msra.mxu0 0.0
    %1504 = vmatprep.subr.mxu0 0.0
    %1505 = vmatpush1.msra.mxu0 0.0
    %1506 = vmatprep.subr.mxu0 0.0
    %1507 = vmatpush1.msra.mxu0 0.0
    %1508 = vmatprep.subr.mxu0 0.0
    %1509 = vmatpush1.msra.mxu0 0.0
    %1510 = vmatprep.subr.mxu0 0.0
    %1511 = vmatpush1.msra.mxu0 0.0
    %1512 = vmatprep.subr.mxu0 0.0
    %1513 = vmatpush1.msra.mxu0 0.0
    %1514 = vmatprep.subr.mxu0 0.0
    %1515 = vmatpush1.msra.mxu0 0.0
    %1516 = vmatprep.subr.mxu0 0.0
    %1517 = vmatpush1.msra.mxu0 0.0
    %1518 = vmatprep.subr.mxu0 0.0
    %1519 = vmatpush1.msra.mxu0 0.0
    %1520 = vmatprep.subr.mxu0 0.0
    %1521 = vmatpush1.msra.mxu0 0.0
    %1522 = vmatprep.subr.mxu0 0.0
    %1523 = vmatpush1.msra.mxu0 0.0
    %1524 = vmatprep.subr.mxu0 0.0
    %1525 = vmatpush1.msra.mxu0 0.0
    %1526 = vmatprep.subr.mxu0 0.0
    %1527 = vmatpush1.msra.mxu0 0.0
    %1528 = vmatprep.subr.mxu0 0.0
    %1529 = vmatpush1.msra.mxu0 0.0
    %1530 = vmatprep.subr.mxu0 0.0
    %1531 = vmatpush1.msra.mxu0 0.0
    %1532 = vmatprep.subr.mxu0 0.0
    %1533 = vmatpush1.msra.mxu0 0.0
    %1534 = vmatprep.subr.mxu0 0.0
    %1535 = vmatpush1.msra.mxu0 0.0
    %1536 = vmatprep.subr.mxu0 0.0
    %1537 = vmatpush1.msra.mxu0 0.0
    %1538 = vmatprep.subr.mxu0 0.0
    %1539 = vmatpush1.msra.mxu0 0.0
    %1540 = vmatprep.subr.mxu0 0.0
    %1541 = vmatpush1.msra.mxu0 0.0
    %1542 = vmatprep.subr.mxu0 0.0
    %1543 = vmatpush1.msra.mxu0 0.0
    %1544 = vmatprep.mubr.f32.mxu0 0.0
    %1545 = vmatmul.mubr.f32.gmra.mrb[0].mxu0 %v1478
    %v1546 = vpop.f32.mrb[0].mxu0
    %v1547 = vadd.f32 %v934, %v1546
    %v1548 = vpop.f32.mrb[0].mxu0
    %1549 = vdwg.mxu0
    %v1550 = vxor.u32 %v1547, 2147483648
    %v1551 = vmul.f32 %v1550, 1.442695
    %v1552 = vpow.pop %v1551
    %v1553 = vadd.f32 %v1552, 1.0
    %v1554 = vrcp.pop %v1553
    %v1555 = vmul.f32 1.0, %v1554
    %v1556 = vtanh.pop %v1547
    %v1557 = vmul.f32 %v1555, %v1459
    %1559 = vrot.lane.b32.xlu0 %v1556, 64
    %v1560 = vpop.permute.xlu0 %1559
    %v1562 = vmul.f32 %v1555, %v1560
    %1564 = vrot.lane.b32.xlu0 %v1562, 32
    %v1565 = vpop.permute.xlu0 %1564
    %v1567 = vadd.f32 %v1557, %v1565
    %v1568 = vtanh.pop %v1567
    %1570 = vrot.lane.b32.xlu0 %v1568, 64
    %v1571 = vpop.permute.xlu0 %1570
    %v1573 = vmul.f32 %v1555, %v1571
    %1575 = vrot.lane.b32.xlu0 %v1573, 32
    %v1576 = vpop.permute.xlu0 %1575
    %s1578 = scalar_lea.vmem %s3, 10
    %1579 = vst.msk [vmem:[%s1578] sm:$0x3] %vm27, %v1576
    %v1580 = vld [vmem:[%s697] sm:$0x3]
    %1581 = vrot.lane.b32.xlu0 %v1573, 64
    %v1582 = vpop.permute.xlu0 %1581
    %v1584 = vsel %vm52, %v1580, %v1582
    %v1586 = vsel %vm54, %v1584, 0
    %1588 = vmatprep.subr.mxu0 0.0
    %1589 = vmatpush1.msra.mxu0 %v920
    %1590 = vmatprep.subr.mxu0 0.0
    %1591 = vmatpush1.msra.mxu0 %v921
    %1592 = vmatprep.subr.mxu0 0.0
    %1593 = vmatpush1.msra.mxu0 %v922
    %1594 = vmatprep.subr.mxu0 0.0
    %1595 = vmatpush1.msra.mxu0 %v923
    %1596 = vmatprep.subr.mxu0 0.0
    %1597 = vmatpush1.msra.mxu0 %v924
    %1598 = vmatprep.subr.mxu0 0.0
    %1599 = vmatpush1.msra.mxu0 %v925
    %1600 = vmatprep.subr.mxu0 0.0
    %1601 = vmatpush1.msra.mxu0 %v926
    %1602 = vmatprep.subr.mxu0 0.0
    %1603 = vmatpush1.msra.mxu0 %v927
    %1604 = vmatprep.subr.mxu0 0.0
    %1605 = vmatpush1.msra.mxu0 0.0
    %1606 = vmatprep.subr.mxu0 0.0
    %1607 = vmatpush1.msra.mxu0 0.0
    %1608 = vmatprep.subr.mxu0 0.0
    %1609 = vmatpush1.msra.mxu0 0.0
    %1610 = vmatprep.subr.mxu0 0.0
    %1611 = vmatpush1.msra.mxu0 0.0
    %1612 = vmatprep.subr.mxu0 0.0
    %1613 = vmatpush1.msra.mxu0 0.0
    %1614 = vmatprep.subr.mxu0 0.0
    %1615 = vmatpush1.msra.mxu0 0.0
    %1616 = vmatprep.subr.mxu0 0.0
    %1617 = vmatpush1.msra.mxu0 0.0
    %1618 = vmatprep.subr.mxu0 0.0
    %1619 = vmatpush1.msra.mxu0 0.0
    %1620 = vmatprep.subr.mxu0 0.0
    %1621 = vmatpush1.msra.mxu0 0.0
    %1622 = vmatprep.subr.mxu0 0.0
    %1623 = vmatpush1.msra.mxu0 0.0
    %1624 = vmatprep.subr.mxu0 0.0
    %1625 = vmatpush1.msra.mxu0 0.0
    %1626 = vmatprep.subr.mxu0 0.0
    %1627 = vmatpush1.msra.mxu0 0.0
    %1628 = vmatprep.subr.mxu0 0.0
    %1629 = vmatpush1.msra.mxu0 0.0
    %1630 = vmatprep.subr.mxu0 0.0
    %1631 = vmatpush1.msra.mxu0 0.0
    %1632 = vmatprep.subr.mxu0 0.0
    %1633 = vmatpush1.msra.mxu0 0.0
    %1634 = vmatprep.subr.mxu0 0.0
    %1635 = vmatpush1.msra.mxu0 0.0
    %1636 = vmatprep.subr.mxu0 0.0
    %1637 = vmatpush1.msra.mxu0 0.0
    %1638 = vmatprep.subr.mxu0 0.0
    %1639 = vmatpush1.msra.mxu0 0.0
    %1640 = vmatprep.subr.mxu0 0.0
    %1641 = vmatpush1.msra.mxu0 0.0
    %1642 = vmatprep.subr.mxu0 0.0
    %1643 = vmatpush1.msra.mxu0 0.0
    %1644 = vmatprep.subr.mxu0 0.0
    %1645 = vmatpush1.msra.mxu0 0.0
    %1646 = vmatprep.subr.mxu0 0.0
    %1647 = vmatpush1.msra.mxu0 0.0
    %1648 = vmatprep.subr.mxu0 0.0
    %1649 = vmatpush1.msra.mxu0 0.0
    %1650 = vmatprep.subr.mxu0 0.0
    %1651 = vmatpush1.msra.mxu0 0.0
    %1652 = vmatprep.mubr.f32.mxu0 0.0
    %1653 = vmatmul.mubr.f32.gmra.mrb[0].mxu0 %v1586
    %v1654 = vpop.f32.mrb[0].mxu0
    %v1655 = vadd.f32 %v934, %v1654
    %v1656 = vpop.f32.mrb[0].mxu0
    %1657 = vdwg.mxu0
    %v1658 = vxor.u32 %v1655, 2147483648
    %v1659 = vmul.f32 %v1658, 1.442695
    %v1660 = vpow.pop %v1659
    %v1661 = vadd.f32 %v1660, 1.0
    %v1662 = vrcp.pop %v1661
    %v1663 = vmul.f32 1.0, %v1662
    %v1664 = vtanh.pop %v1655
    %v1665 = vmul.f32 %v1663, %v1567
    %1667 = vrot.lane.b32.xlu0 %v1664, 64
    %v1668 = vpop.permute.xlu0 %1667
    %v1670 = vmul.f32 %v1663, %v1668
    %1672 = vrot.lane.b32.xlu0 %v1670, 32
    %v1673 = vpop.permute.xlu0 %1672
    %v1675 = vadd.f32 %v1665, %v1673
    %v1676 = vtanh.pop %v1675
    %1678 = vrot.lane.b32.xlu0 %v1676, 64
    %v1679 = vpop.permute.xlu0 %1678
    %v1681 = vmul.f32 %v1663, %v1679
    %1683 = vrot.lane.b32.xlu0 %v1681, 32
    %v1684 = vpop.permute.xlu0 %1683
    %s1686 = scalar_lea.vmem %s3, 12
    %1687 = vst.msk [vmem:[%s1686] sm:$0x3] %vm27, %v1684
    %v1688 = vld [vmem:[%s805] sm:$0x3]
    %1689 = vrot.lane.b32.xlu0 %v1681, 64
    %v1690 = vpop.permute.xlu0 %1689
    %v1692 = vsel %vm52, %v1688, %v1690
    %v1694 = vsel %vm54, %v1692, 0
    %1696 = vmatprep.subr.mxu0 0.0
    %1697 = vmatpush1.msra.mxu0 %v920
    %1698 = vmatprep.subr.mxu0 0.0
    %1699 = vmatpush1.msra.mxu0 %v921
    %1700 = vmatprep.subr.mxu0 0.0
    %1701 = vmatpush1.msra.mxu0 %v922
    %1702 = vmatprep.subr.mxu0 0.0
    %1703 = vmatpush1.msra.mxu0 %v923
    %1704 = vmatprep.subr.mxu0 0.0
    %1705 = vmatpush1.msra.mxu0 %v924
    %1706 = vmatprep.subr.mxu0 0.0
    %1707 = vmatpush1.msra.mxu0 %v925
    %1708 = vmatprep.subr.mxu0 0.0
    %1709 = vmatpush1.msra.mxu0 %v926
    %1710 = vmatprep.subr.mxu0 0.0
    %1711 = vmatpush1.msra.mxu0 %v927
    %1712 = vmatprep.subr.mxu0 0.0
    %1713 = vmatpush1.msra.mxu0 0.0
    %1714 = vmatprep.subr.mxu0 0.0
    %1715 = vmatpush1.msra.mxu0 0.0
    %1716 = vmatprep.subr.mxu0 0.0
    %1717 = vmatpush1.msra.mxu0 0.0
    %1718 = vmatprep.subr.mxu0 0.0
    %1719 = vmatpush1.msra.mxu0 0.0
    %1720 = vmatprep.subr.mxu0 0.0
    %1721 = vmatpush1.msra.mxu0 0.0
    %1722 = vmatprep.subr.mxu0 0.0
    %1723 = vmatpush1.msra.mxu0 0.0
    %1724 = vmatprep.subr.mxu0 0.0
    %1725 = vmatpush1.msra.mxu0 0.0
    %1726 = vmatprep.subr.mxu0 0.0
    %1727 = vmatpush1.msra.mxu0 0.0
    %1728 = vmatprep.subr.mxu0 0.0
    %1729 = vmatpush1.msra.mxu0 0.0
    %1730 = vmatprep.subr.mxu0 0.0
    %1731 = vmatpush1.msra.mxu0 0.0
    %1732 = vmatprep.subr.mxu0 0.0
    %1733 = vmatpush1.msra.mxu0 0.0
    %1734 = vmatprep.subr.mxu0 0.0
    %1735 = vmatpush1.msra.mxu0 0.0
    %1736 = vmatprep.subr.mxu0 0.0
    %1737 = vmatpush1.msra.mxu0 0.0
    %1738 = vmatprep.subr.mxu0 0.0
    %1739 = vmatpush1.msra.mxu0 0.0
    %1740 = vmatprep.subr.mxu0 0.0
    %1741 = vmatpush1.msra.mxu0 0.0
    %1742 = vmatprep.subr.mxu0 0.0
    %1743 = vmatpush1.msra.mxu0 0.0
    %1744 = vmatprep.subr.mxu0 0.0
    %1745 = vmatpush1.msra.mxu0 0.0
    %1746 = vmatprep.subr.mxu0 0.0
    %1747 = vmatpush1.msra.mxu0 0.0
    %1748 = vmatprep.subr.mxu0 0.0
    %1749 = vmatpush1.msra.mxu0 0.0
    %1750 = vmatprep.subr.mxu0 0.0
    %1751 = vmatpush1.msra.mxu0 0.0
    %1752 = vmatprep.subr.mxu0 0.0
    %1753 = vmatpush1.msra.mxu0 0.0
    %1754 = vmatprep.subr.mxu0 0.0
    %1755 = vmatpush1.msra.mxu0 0.0
    %1756 = vmatprep.subr.mxu0 0.0
    %1757 = vmatpush1.msra.mxu0 0.0
    %1758 = vmatprep.subr.mxu0 0.0
    %1759 = vmatpush1.msra.mxu0 0.0
    %1760 = vmatprep.mubr.f32.mxu0 0.0
    %1761 = vmatmul.mubr.f32.gmra.mrb[0].mxu0 %v1694
    %v1762 = vpop.f32.mrb[0].mxu0
    %v1763 = vadd.f32 %v934, %v1762
    %v1764 = vpop.f32.mrb[0].mxu0
    %1765 = vdwg.mxu0
    %v1766 = vxor.u32 %v1763, 2147483648
    %v1767 = vmul.f32 %v1766, 1.442695
    %v1768 = vpow.pop %v1767
    %v1769 = vadd.f32 %v1768, 1.0
    %v1770 = vrcp.pop %v1769
    %v1771 = vmul.f32 1.0, %v1770
    %v1772 = vtanh.pop %v1763
    %v1773 = vmul.f32 %v1771, %v1675
    %1775 = vrot.lane.b32.xlu0 %v1772, 64
    %v1776 = vpop.permute.xlu0 %1775
    %v1778 = vmul.f32 %v1771, %v1776
    %1780 = vrot.lane.b32.xlu0 %v1778, 32
    %v1781 = vpop.permute.xlu0 %1780
    %v1783 = vadd.f32 %v1773, %v1781
    %v1784 = vtanh.pop %v1783
    %1786 = vrot.lane.b32.xlu0 %v1784, 64
    %v1787 = vpop.permute.xlu0 %1786
    %v1789 = vmul.f32 %v1771, %v1787
    %1791 = vrot.lane.b32.xlu0 %v1789, 32
    %v1792 = vpop.permute.xlu0 %1791
    %s1794 = scalar_lea.vmem %s3, 14
    %1795 = vst.msk [vmem:[%s1794] sm:$0x3] %vm27, %v1792
    %s1796 = scalar_lea.vmem [#allocation3], 2
    %1797 = vst.msk [vmem:[%s1796] sm:$0x3] %vm27, %v1792
    %1799 = vrot.lane.b32.xlu0 %v1783, 96
    %v1800 = vpop.permute.xlu0 %1799
    %s1802 = scalar_lea.vmem [#allocation5], 2
    %1803 = vst.msk [vmem:[%s1802] sm:$0x3] %vm27, %v1800
    // Predicated region
    $region14: #{rnn_model_forward.1} parent=1 // pred_check
      _
    $region15: #{rnn_model_forward.1} parent=1 // pred_check_branch
      %1805 = sbr.rel (0) target = $region17
    $region16: #{rnn_model_forward.1} parent=1 // pred_region
      _
    $region17: #{rnn_model_forward.1} parent=1 // pred_fallthru
      _
    // Predicated region
    $region18: #{rnn_model_forward.1} parent=1 // pred_check
      _
    $region19: #{rnn_model_forward.1} parent=1 // pred_check_branch
      %1807 = sbr.rel (0) target = $region21
    $region20: #{rnn_model_forward.1} parent=1 // pred_region
      %s1809 = ssub.s32 64, 64
      %1810 = vsyncadd [#allocation4], %s1809
      %s1811 = sshll.u32 [#allocation3], 4
      %s1812 = int_to_ptr.vmem [resolvable:$true] %s1811
      %1817 = dma.vmem_to_hbm [thread:$0]  %s1812, 64, %s4, [#allocation4], 32, 32, 2
    $region21: #{rnn_model_forward.1} parent=1 // pred_fallthru
      _
    // Predicated region
    $region22: #{rnn_model_forward.1} parent=1 // pred_check
      _
    $region23: #{rnn_model_forward.1} parent=1 // pred_check_branch
      %1819 = sbr.rel (0) target = $region25
    $region24: #{rnn_model_forward.1} parent=1 // pred_region
      %s1821 = ssub.s32 64, 64
      %1822 = vsyncadd [#allocation6], %s1821
      %s1823 = sshll.u32 [#allocation5], 4
      %s1824 = int_to_ptr.vmem [resolvable:$true] %s1823
      %1829 = dma.vmem_to_hbm [thread:$0]  %s1824, 64, %s5, [#allocation6], 32, 32, 2
    $region25: #{rnn_model_forward.1} parent=1 // pred_fallthru
      _
    // Predicated region
    $region26: #{rnn_model_forward.1} parent=1 // pred_check
      _
    $region27: #{rnn_model_forward.1} parent=1 // pred_check_branch
      %1831 = sbr.rel (0) target = $region29
    $region28: #{rnn_model_forward.1} parent=1 // pred_region
      _
    $region29: #{rnn_model_forward.1} parent=1 // pred_fallthru
      _
    // Predicated region
    $region30: #{rnn_model_forward.1} parent=1 // pred_check
      _
    $region31: #{rnn_model_forward.1} parent=1 // pred_check_branch
      %1833 = sbr.rel (0) target = $region33
    $region32: #{rnn_model_forward.1} parent=1 // pred_region
      %1834 = dma.done [#allocation4], 64
    $region33: #{rnn_model_forward.1} parent=1 // pred_fallthru
      _
    // Predicated region
    $region34: #{rnn_model_forward.1} parent=1 // pred_check
      _
    $region35: #{rnn_model_forward.1} parent=1 // pred_check_branch
      %1836 = sbr.rel (0) target = $region37
    $region36: #{rnn_model_forward.1} parent=1 // pred_region
      %1837 = dma.done [#allocation6], 64
    $region37: #{rnn_model_forward.1} parent=1 // pred_fallthru
      _
    %1838 = vsyncpa [#allocation4], 1
    %1839 = vsyncpa [#allocation6], 1

</llo_original>
